<compile_context>
chip_gen: v7x
topology: tpu7x:2x2x1
jax: 0.10.0
libtpu: 0.0.40
codegen_flags: <defaults>
</compile_context>

<pallas_src>
import jax
import jax.numpy as jnp
from jax import lax
from jax.experimental import pallas as pl
from jax.experimental.pallas import tpu as pltpu


def _round_up(x, m):
    return ((x + m - 1) // m) * m


def text_encoder_kernel(x_ref, wih_ref, bias_ref, whh_ref, wheads_ref, bheads_ref,
                        out_ref, pre_scr):
    """One batch-chunk: fused input projection + LSTM recurrence + fused heads.

    x_ref      : (1, T*Bc, E) f32  embedded tokens, rows ordered t-major / batch-minor
    wih_ref    : (E, 4H)      f32  input weights,    gate order [i, f, o, g]
    bias_ref   : (1, 4H)      f32  b_ih + b_hh,      gate order [i, f, o, g]
    whh_ref    : (H, 4H)      f32  recurrent weights, gate order [i, f, o, g]
    wheads_ref : (H, P)       f32  [W_mu | W_logvar | W_cls | zero-pad], P % 128 == 0
    bheads_ref : (1, P)       f32
    out_ref    : (Bc, P)      f32  lane-dense fused head output
    pre_scr    : (T*Bc, 4H)   f32  VMEM scratch for all pre-activations
    """
    TB = x_ref.shape[1]
    H = whh_ref.shape[0]
    Bc = out_ref.shape[0]
    T = TB // Bc

    # Input projection for every timestep in a single MXU launch; the result stays
    # in VMEM (never written back to HBM).
    pre_scr[...] = (
        jnp.dot(x_ref[0], wih_ref[...], preferred_element_type=jnp.float32)
        + bias_ref[...]
    )

    def step(t, carry):
        h, c = carry
        row = pl.multiple_of(t * Bc, Bc)
        # Only the recurrent projection is truly sequential.
        gates = pre_scr[pl.ds(row, Bc), :] + jnp.dot(
            h, whh_ref[...], preferred_element_type=jnp.float32)
        ifo = jax.nn.sigmoid(gates[:, 0:3 * H])      # i, f, o in one wide EUP slab
        g_g = jnp.tanh(gates[:, 3 * H:4 * H])
        i_g = ifo[:, 0:H]
        f_g = ifo[:, H:2 * H]
        o_g = ifo[:, 2 * H:3 * H]
        c_new = f_g * c + i_g * g_g
        h_new = o_g * jnp.tanh(c_new)
        return (h_new, c_new)

    h0 = jnp.zeros((Bc, H), jnp.float32)
    c0 = jnp.zeros((Bc, H), jnp.float32)
    h, _ = lax.fori_loop(0, T, step, (h0, c0), unroll=(T <= 32))

    # Fused heads: one MXU launch, one lane-dense (>=128 lane) store.
    out_ref[...] = (
        jnp.dot(h, wheads_ref[...], preferred_element_type=jnp.float32)
        + bheads_ref[...]
    )


def text_encoder_forward(x_ids, params):
    """x_ids: (B, T) int32 token ids. Returns (style_mu, style_logvar, class_out)."""
    B, T = x_ids.shape
    E = params["embedding"].shape[1]
    H = params["w_hh"].shape[0]
    S = params["w_mu"].shape[1]
    C = params["w_cls"].shape[1]

    # Gate-column permutation: PyTorch [i, f, g, o] -> kernel [i, f, o, g].
    def reorder(w):
        return jnp.concatenate(
            [w[..., 0:2 * H], w[..., 3 * H:4 * H], w[..., 2 * H:3 * H]], axis=-1)

    w_ih = reorder(params["w_ih"]).astype(jnp.float32)
    w_hh = reorder(params["w_hh"]).astype(jnp.float32)
    bias = reorder(params["bias"]).astype(jnp.float32)

    # 1) Embedding gather (data-dependent -> plain XLA glue).
    x_emb = jnp.take(params["embedding"], x_ids, axis=0).astype(jnp.float32)  # (B, T, E)

    # 2) Pad batch to full f32 sublanes and split into independent ("parallel") chunks.
    B_chunk = 128 if B >= 128 else _round_up(B, 8)
    B_pad = _round_up(B, B_chunk)
    n_chunks = B_pad // B_chunk
    if B_pad != B:
        x_emb = jnp.pad(x_emb, ((0, B_pad - B), (0, 0), (0, 0)))

    # 3) Lay out x as (n_chunks, T*B_chunk, E), rows t-major / batch-minor within a
    #    chunk, so the kernel's per-step slab pre[t*Bc:(t+1)*Bc, :] is contiguous and
    #    no in-kernel reshape is needed.
    x_kern = (x_emb.transpose(1, 0, 2)                       # (T, B_pad, E)
              .reshape(T, n_chunks, B_chunk, E)
              .transpose(1, 0, 2, 3)                         # (n_chunks, T, B_chunk, E)
              .reshape(n_chunks, T * B_chunk, E))

    # 4) Fuse the three heads into one lane-dense (128-padded) matmul.
    out_cols = 2 * S + C
    P = _round_up(out_cols, 128)
    w_heads = jnp.concatenate(
        [params["w_mu"], params["w_lv"], params["w_cls"]], axis=1)   # (H, 2S+C)
    b_heads = jnp.concatenate(
        [params["b_mu"], params["b_lv"], params["b_cls"]], axis=1)   # (1, 2S+C)
    w_heads = jnp.pad(w_heads, ((0, 0), (0, P - out_cols))).astype(jnp.float32)
    b_heads = jnp.pad(b_heads, ((0, 0), (0, P - out_cols))).astype(jnp.float32)

    const = lambda shape: pl.BlockSpec(shape, lambda b, _s=len(shape): (0,) * _s)

    # Explicit (generous) VMEM budget: actual footprint + headroom, capped well below
    # every chip's physical VMEM so the same kernel runs on v5e / v6e / v7x.
    vmem_bytes = 4 * (2 * T * B_chunk * E          # x (double-buffered)
                      + T * B_chunk * 4 * H        # pre-activation scratch
                      + E * 4 * H + H * 4 * H      # W_ih, W_hh
                      + H * P + 4 * H + P          # fused head W + biases
                      + 2 * B_chunk * P)           # output (double-buffered)
    vmem_bytes = min(max(vmem_bytes + (1 << 20), 4 << 20), 32 << 20)

    out = pl.pallas_call(
        text_encoder_kernel,
        out_shape=jax.ShapeDtypeStruct((B_pad, P), jnp.float32),
        grid_spec=pltpu.PrefetchScalarGridSpec(
            num_scalar_prefetch=0,
            grid=(n_chunks,),
            in_specs=[
                pl.BlockSpec((1, T * B_chunk, E), lambda b: (b, 0, 0)),  # embedded x
                const((E, 4 * H)),                                       # W_ih
                const((1, 4 * H)),                                       # bias
                const((H, 4 * H)),                                       # W_hh
                const((H, P)),                                           # fused head W
                const((1, P)),                                           # fused head b
            ],
            out_specs=pl.BlockSpec((B_chunk, P), lambda b: (b, 0)),
            scratch_shapes=[pltpu.VMEM((T * B_chunk, 4 * H), jnp.float32)],
        ),
        compiler_params=pltpu.CompilerParams(
            # Batch chunks are independent -> shard across TensorCores; the whole
            # time recurrence lives inside a single grid step.
            dimension_semantics=("parallel",),
            vmem_limit_bytes=vmem_bytes,
        ),
    )(x_kern, w_ih, bias, w_hh, w_heads, b_heads)

    mu = out[:B, 0:S]
    lv = out[:B, S:2 * S]
    cls = out[:B, 2 * S:2 * S + C]
    # TODO(synk): for large hidden sizes, store W_hh / W_heads in bf16 (f32 accum)
    # to halve weight VMEM; kept f32 here to preserve exact reference numerics.
    return mu, lv, cls


def init_params(key, vocab_size, embedding_dim, hidden, style_dim, class_dim):
    ks = jax.random.split(key, 10)
    scale = 0.1
    return {
        "embedding": scale * jax.random.normal(ks[0], (vocab_size, embedding_dim), jnp.float32),
        "w_ih": scale * jax.random.normal(ks[1], (embedding_dim, 4 * hidden), jnp.float32),
        "w_hh": scale * jax.random.normal(ks[2], (hidden, 4 * hidden), jnp.float32),
        # bias = b_ih + b_hh combined (PyTorch gate order i, f, g, o)
        "bias": scale * jax.random.normal(ks[3], (1, 4 * hidden), jnp.float32),
        "w_mu": scale * jax.random.normal(ks[4], (hidden, style_dim), jnp.float32),
        "b_mu": scale * jax.random.normal(ks[5], (1, style_dim), jnp.float32),
        "w_lv": scale * jax.random.normal(ks[6], (hidden, style_dim), jnp.float32),
        "b_lv": scale * jax.random.normal(ks[7], (1, style_dim), jnp.float32),
        "w_cls": scale * jax.random.normal(ks[8], (hidden, class_dim), jnp.float32),
        "b_cls": scale * jax.random.normal(ks[9], (1, class_dim), jnp.float32),
    }


def _reference_forward(x_ids, params):
    """Pure-JAX reference of the same LSTM + heads (PyTorch gate order i,f,g,o)."""
    emb = jnp.take(params["embedding"], x_ids, axis=0)   # (B, T, E)
    B, T, _ = emb.shape
    H = params["w_hh"].shape[0]
    h = jnp.zeros((B, H), jnp.float32)
    c = jnp.zeros((B, H), jnp.float32)
    for t in range(T):
        gates = emb[:, t, :] @ params["w_ih"] + h @ params["w_hh"] + params["bias"]
        i = jax.nn.sigmoid(gates[:, 0 * H:1 * H])
        f = jax.nn.sigmoid(gates[:, 1 * H:2 * H])
        g = jnp.tanh(gates[:, 2 * H:3 * H])
        o = jax.nn.sigmoid(gates[:, 3 * H:4 * H])
        c = f * c + i * g
        h = o * jnp.tanh(c)
    mu = h @ params["w_mu"] + params["b_mu"]
    lv = h @ params["w_lv"] + params["b_lv"]
    cls = h @ params["w_cls"] + params["b_cls"]
    return mu, lv, cls


if __name__ == "__main__":
    # Small, forward-consistent shapes (LSTM hidden = 128 fixed by the module).
    vocab_size, embedding_dim, hidden = 50, 32, 128
    style_dim, class_dim = 8, 4
    B, T = 2, 8

    key = jax.random.PRNGKey(0)
    k_param, k_ids = jax.random.split(key)
    params = init_params(k_param, vocab_size, embedding_dim, hidden, style_dim, class_dim)
    x_ids = jax.random.randint(k_ids, (B, T), 0, vocab_size, dtype=jnp.int32)

    mu, logvar, cls = text_encoder_forward(x_ids, params)
    jax.block_until_ready((mu, logvar, cls))

    # Sanity check against the pure-JAX reference.
    mu_r, lv_r, cls_r = _reference_forward(x_ids, params)
    assert jnp.allclose(mu, mu_r, atol=1e-4), "style_mu mismatch"
    assert jnp.allclose(logvar, lv_r, atol=1e-4), "style_logvar mismatch"
    assert jnp.allclose(cls, cls_r, atol=1e-4), "class_output mismatch"

    print("KERNEL_OK")
</pallas_src>

<mosaic_0001>
module attributes {stable_mosaic.version = 11 : i64} {
  func.func @text_encoder_kernel(%arg0: i32, %arg1: memref<1x64x32xf32, #tpu.memory_space<vmem>>, %arg2: memref<32x512xf32, #tpu.memory_space<vmem>>, %arg3: memref<1x512xf32, #tpu.memory_space<vmem>>, %arg4: memref<128x512xf32, #tpu.memory_space<vmem>>, %arg5: memref<128x128xf32, #tpu.memory_space<vmem>>, %arg6: memref<1x128xf32, #tpu.memory_space<vmem>>, %arg7: memref<8x128xf32, #tpu.memory_space<vmem>>, %arg8: memref<64x512xf32, #tpu.memory_space<vmem>>) attributes {dimension_semantics = [#tpu.dimension_semantics<parallel>], iteration_bounds = array<i64: 1>, scalar_prefetch = 0 : i64, scratch_operands = 1 : i64, tpu.core_type = #tpu.core_type<tc>, window_params = [{transform_indices = @transform_0, window_bounds = array<i64: 1, 64, 32>}, {pipeline_mode = #tpu.pipeline_mode<synchronous>, transform_indices = @transform_1, window_bounds = array<i64: 32, 512>}, {pipeline_mode = #tpu.pipeline_mode<synchronous>, transform_indices = @transform_2, window_bounds = array<i64: 1, 512>}, {pipeline_mode = #tpu.pipeline_mode<synchronous>, transform_indices = @transform_3, window_bounds = array<i64: 128, 512>}, {pipeline_mode = #tpu.pipeline_mode<synchronous>, transform_indices = @transform_4, window_bounds = array<i64: 128, 128>}, {pipeline_mode = #tpu.pipeline_mode<synchronous>, transform_indices = @transform_5, window_bounds = array<i64: 1, 128>}, {transform_indices = @transform_6, window_bounds = array<i64: 8, 128>}]} {
    %c0 = arith.constant 0 : index
    %c0_0 = arith.constant 0 : index
    %c0_1 = arith.constant 0 : index
    %0 = vector.load %arg1[%c0, %c0_0, %c0_1] : memref<1x64x32xf32, #tpu.memory_space<vmem>>, vector<1x64x32xf32>
    %1 = vector.shape_cast %0 : vector<1x64x32xf32> to vector<64x32xf32>
    %c0_2 = arith.constant 0 : index
    %c0_3 = arith.constant 0 : index
    %2 = vector.load %arg2[%c0_2, %c0_3] : memref<32x512xf32, #tpu.memory_space<vmem>>, vector<32x512xf32>
    %cst = arith.constant dense<0.000000e+00> : vector<64x512xf32>
    %3 = tpu.matmul %1, %2, %cst {dimension_numbers = #tpu.dot_dimension_numbers<[1], [0], [0], [1], [0, 0, 1, 1], [], []>} : vector<64x32xf32>, vector<32x512xf32>, vector<64x512xf32> -> vector<64x512xf32>
    %c0_4 = arith.constant 0 : index
    %c0_5 = arith.constant 0 : index
    %4 = vector.load %arg3[%c0_4, %c0_5] : memref<1x512xf32, #tpu.memory_space<vmem>>, vector<1x512xf32>
    %5 = vector.broadcast %4 : vector<1x512xf32> to vector<64x512xf32>
    %6 = arith.addf %3, %5 : vector<64x512xf32>
    %c0_6 = arith.constant 0 : index
    %c0_7 = arith.constant 0 : index
    %7 = vector.load %arg8[%c0_6, %c0_7] : memref<64x512xf32, #tpu.memory_space<vmem>>, vector<64x512xf32>
    tpu.vector_store %arg8[%c0_6, %c0_7], %6 {strides = array<i32>} : memref<64x512xf32, #tpu.memory_space<vmem>>, vector<64x512xf32>,
    %cst_8 = arith.constant 0.000000e+00 : f32
    %8 = vector.broadcast %cst_8 : f32 to vector<8x128xf32>
    %cst_9 = arith.constant 0.000000e+00 : f32
    %9 = vector.broadcast %cst_9 : f32 to vector<8x128xf32>
    %c0_i32 = arith.constant 0 : i32
    %c8_i32 = arith.constant 8 : i32
    %10 = arith.muli %c0_i32, %c8_i32 : i32
    %11 = tpu.assume_multiple %10, 8 : i32
    %12 = arith.index_cast %11 : i32 to index
    %c0_10 = arith.constant 0 : index
    %13 = vector.load %arg8[%12, %c0_10] : memref<64x512xf32, #tpu.memory_space<vmem>>, vector<8x512xf32>
    %c0_11 = arith.constant 0 : index
    %c0_12 = arith.constant 0 : index
    %14 = vector.load %arg4[%c0_11, %c0_12] : memref<128x512xf32, #tpu.memory_space<vmem>>, vector<128x512xf32>
    %cst_13 = arith.constant dense<0.000000e+00> : vector<8x512xf32>
    %15 = tpu.matmul %8, %14, %cst_13 {dimension_numbers = #tpu.dot_dimension_numbers<[1], [0], [0], [1], [0, 0, 1, 1], [], []>} : vector<8x128xf32>, vector<128x512xf32>, vector<8x512xf32> -> vector<8x512xf32>
    %16 = arith.addf %13, %15 : vector<8x512xf32>
    %17 = vector.extract_strided_slice %16 {offsets = [0, 0], sizes = [8, 384], strides = [1, 1]} : vector<8x512xf32> to vector<8x384xf32>
    %18 = arith.negf %17 : vector<8x384xf32>
    %19 = math.exp %18 : vector<8x384xf32>
    %cst_14 = arith.constant 1.000000e+00 : f32
    %20 = vector.broadcast %cst_14 : f32 to vector<8x384xf32>
    %21 = arith.addf %20, %19 : vector<8x384xf32>
    %22 = arith.divf %20, %21 : vector<8x384xf32>
    %23 = vector.extract_strided_slice %16 {offsets = [0, 384], sizes = [8, 128], strides = [1, 1]} : vector<8x512xf32> to vector<8x128xf32>
    %24 = math.tanh %23 : vector<8x128xf32>
    %25 = vector.extract_strided_slice %22 {offsets = [0, 0], sizes = [8, 128], strides = [1, 1]} : vector<8x384xf32> to vector<8x128xf32>
    %26 = vector.extract_strided_slice %22 {offsets = [0, 128], sizes = [8, 128], strides = [1, 1]} : vector<8x384xf32> to vector<8x128xf32>
    %27 = vector.extract_strided_slice %22 {offsets = [0, 256], sizes = [8, 128], strides = [1, 1]} : vector<8x384xf32> to vector<8x128xf32>
    %28 = arith.mulf %26, %9 : vector<8x128xf32>
    %29 = arith.mulf %25, %24 : vector<8x128xf32>
    %30 = arith.addf %28, %29 : vector<8x128xf32>
    %31 = math.tanh %30 : vector<8x128xf32>
    %32 = arith.mulf %27, %31 : vector<8x128xf32>
    %c1_i32 = arith.constant 1 : i32
    %c8_i32_15 = arith.constant 8 : i32
    %33 = arith.muli %c1_i32, %c8_i32_15 : i32
    %34 = tpu.assume_multiple %33, 8 : i32
    %35 = arith.index_cast %34 : i32 to index
    %c0_16 = arith.constant 0 : index
    %36 = vector.load %arg8[%35, %c0_16] : memref<64x512xf32, #tpu.memory_space<vmem>>, vector<8x512xf32>
    %c0_17 = arith.constant 0 : index
    %c0_18 = arith.constant 0 : index
    %37 = vector.load %arg4[%c0_17, %c0_18] : memref<128x512xf32, #tpu.memory_space<vmem>>, vector<128x512xf32>
    %cst_19 = arith.constant dense<0.000000e+00> : vector<8x512xf32>
    %38 = tpu.matmul %32, %37, %cst_19 {dimension_numbers = #tpu.dot_dimension_numbers<[1], [0], [0], [1], [0, 0, 1, 1], [], []>} : vector<8x128xf32>, vector<128x512xf32>, vector<8x512xf32> -> vector<8x512xf32>
    %39 = arith.addf %36, %38 : vector<8x512xf32>
    %40 = vector.extract_strided_slice %39 {offsets = [0, 0], sizes = [8, 384], strides = [1, 1]} : vector<8x512xf32> to vector<8x384xf32>
    %41 = arith.negf %40 : vector<8x384xf32>
    %42 = math.exp %41 : vector<8x384xf32>
    %cst_20 = arith.constant 1.000000e+00 : f32
    %43 = vector.broadcast %cst_20 : f32 to vector<8x384xf32>
    %44 = arith.addf %43, %42 : vector<8x384xf32>
    %45 = arith.divf %43, %44 : vector<8x384xf32>
    %46 = vector.extract_strided_slice %39 {offsets = [0, 384], sizes = [8, 128], strides = [1, 1]} : vector<8x512xf32> to vector<8x128xf32>
    %47 = math.tanh %46 : vector<8x128xf32>
    %48 = vector.extract_strided_slice %45 {offsets = [0, 0], sizes = [8, 128], strides = [1, 1]} : vector<8x384xf32> to vector<8x128xf32>
    %49 = vector.extract_strided_slice %45 {offsets = [0, 128], sizes = [8, 128], strides = [1, 1]} : vector<8x384xf32> to vector<8x128xf32>
    %50 = vector.extract_strided_slice %45 {offsets = [0, 256], sizes = [8, 128], strides = [1, 1]} : vector<8x384xf32> to vector<8x128xf32>
    %51 = arith.mulf %49, %30 : vector<8x128xf32>
    %52 = arith.mulf %48, %47 : vector<8x128xf32>
    %53 = arith.addf %51, %52 : vector<8x128xf32>
    %54 = math.tanh %53 : vector<8x128xf32>
    %55 = arith.mulf %50, %54 : vector<8x128xf32>
    %c2_i32 = arith.constant 2 : i32
    %c8_i32_21 = arith.constant 8 : i32
    %56 = arith.muli %c2_i32, %c8_i32_21 : i32
    %57 = tpu.assume_multiple %56, 8 : i32
    %58 = arith.index_cast %57 : i32 to index
    %c0_22 = arith.constant 0 : index
    %59 = vector.load %arg8[%58, %c0_22] : memref<64x512xf32, #tpu.memory_space<vmem>>, vector<8x512xf32>
    %c0_23 = arith.constant 0 : index
    %c0_24 = arith.constant 0 : index
    %60 = vector.load %arg4[%c0_23, %c0_24] : memref<128x512xf32, #tpu.memory_space<vmem>>, vector<128x512xf32>
    %cst_25 = arith.constant dense<0.000000e+00> : vector<8x512xf32>
    %61 = tpu.matmul %55, %60, %cst_25 {dimension_numbers = #tpu.dot_dimension_numbers<[1], [0], [0], [1], [0, 0, 1, 1], [], []>} : vector<8x128xf32>, vector<128x512xf32>, vector<8x512xf32> -> vector<8x512xf32>
    %62 = arith.addf %59, %61 : vector<8x512xf32>
    %63 = vector.extract_strided_slice %62 {offsets = [0, 0], sizes = [8, 384], strides = [1, 1]} : vector<8x512xf32> to vector<8x384xf32>
    %64 = arith.negf %63 : vector<8x384xf32>
    %65 = math.exp %64 : vector<8x384xf32>
    %cst_26 = arith.constant 1.000000e+00 : f32
    %66 = vector.broadcast %cst_26 : f32 to vector<8x384xf32>
    %67 = arith.addf %66, %65 : vector<8x384xf32>
    %68 = arith.divf %66, %67 : vector<8x384xf32>
    %69 = vector.extract_strided_slice %62 {offsets = [0, 384], sizes = [8, 128], strides = [1, 1]} : vector<8x512xf32> to vector<8x128xf32>
    %70 = math.tanh %69 : vector<8x128xf32>
    %71 = vector.extract_strided_slice %68 {offsets = [0, 0], sizes = [8, 128], strides = [1, 1]} : vector<8x384xf32> to vector<8x128xf32>
    %72 = vector.extract_strided_slice %68 {offsets = [0, 128], sizes = [8, 128], strides = [1, 1]} : vector<8x384xf32> to vector<8x128xf32>
    %73 = vector.extract_strided_slice %68 {offsets = [0, 256], sizes = [8, 128], strides = [1, 1]} : vector<8x384xf32> to vector<8x128xf32>
    %74 = arith.mulf %72, %53 : vector<8x128xf32>
    %75 = arith.mulf %71, %70 : vector<8x128xf32>
    %76 = arith.addf %74, %75 : vector<8x128xf32>
    %77 = math.tanh %76 : vector<8x128xf32>
    %78 = arith.mulf %73, %77 : vector<8x128xf32>
    %c3_i32 = arith.constant 3 : i32
    %c8_i32_27 = arith.constant 8 : i32
    %79 = arith.muli %c3_i32, %c8_i32_27 : i32
    %80 = tpu.assume_multiple %79, 8 : i32
    %81 = arith.index_cast %80 : i32 to index
    %c0_28 = arith.constant 0 : index
    %82 = vector.load %arg8[%81, %c0_28] : memref<64x512xf32, #tpu.memory_space<vmem>>, vector<8x512xf32>
    %c0_29 = arith.constant 0 : index
    %c0_30 = arith.constant 0 : index
    %83 = vector.load %arg4[%c0_29, %c0_30] : memref<128x512xf32, #tpu.memory_space<vmem>>, vector<128x512xf32>
    %cst_31 = arith.constant dense<0.000000e+00> : vector<8x512xf32>
    %84 = tpu.matmul %78, %83, %cst_31 {dimension_numbers = #tpu.dot_dimension_numbers<[1], [0], [0], [1], [0, 0, 1, 1], [], []>} : vector<8x128xf32>, vector<128x512xf32>, vector<8x512xf32> -> vector<8x512xf32>
    %85 = arith.addf %82, %84 : vector<8x512xf32>
    %86 = vector.extract_strided_slice %85 {offsets = [0, 0], sizes = [8, 384], strides = [1, 1]} : vector<8x512xf32> to vector<8x384xf32>
    %87 = arith.negf %86 : vector<8x384xf32>
    %88 = math.exp %87 : vector<8x384xf32>
    %cst_32 = arith.constant 1.000000e+00 : f32
    %89 = vector.broadcast %cst_32 : f32 to vector<8x384xf32>
    %90 = arith.addf %89, %88 : vector<8x384xf32>
    %91 = arith.divf %89, %90 : vector<8x384xf32>
    %92 = vector.extract_strided_slice %85 {offsets = [0, 384], sizes = [8, 128], strides = [1, 1]} : vector<8x512xf32> to vector<8x128xf32>
    %93 = math.tanh %92 : vector<8x128xf32>
    %94 = vector.extract_strided_slice %91 {offsets = [0, 0], sizes = [8, 128], strides = [1, 1]} : vector<8x384xf32> to vector<8x128xf32>
    %95 = vector.extract_strided_slice %91 {offsets = [0, 128], sizes = [8, 128], strides = [1, 1]} : vector<8x384xf32> to vector<8x128xf32>
    %96 = vector.extract_strided_slice %91 {offsets = [0, 256], sizes = [8, 128], strides = [1, 1]} : vector<8x384xf32> to vector<8x128xf32>
    %97 = arith.mulf %95, %76 : vector<8x128xf32>
    %98 = arith.mulf %94, %93 : vector<8x128xf32>
    %99 = arith.addf %97, %98 : vector<8x128xf32>
    %100 = math.tanh %99 : vector<8x128xf32>
    %101 = arith.mulf %96, %100 : vector<8x128xf32>
    %c4_i32 = arith.constant 4 : i32
    %c8_i32_33 = arith.constant 8 : i32
    %102 = arith.muli %c4_i32, %c8_i32_33 : i32
    %103 = tpu.assume_multiple %102, 8 : i32
    %104 = arith.index_cast %103 : i32 to index
    %c0_34 = arith.constant 0 : index
    %105 = vector.load %arg8[%104, %c0_34] : memref<64x512xf32, #tpu.memory_space<vmem>>, vector<8x512xf32>
    %c0_35 = arith.constant 0 : index
    %c0_36 = arith.constant 0 : index
    %106 = vector.load %arg4[%c0_35, %c0_36] : memref<128x512xf32, #tpu.memory_space<vmem>>, vector<128x512xf32>
    %cst_37 = arith.constant dense<0.000000e+00> : vector<8x512xf32>
    %107 = tpu.matmul %101, %106, %cst_37 {dimension_numbers = #tpu.dot_dimension_numbers<[1], [0], [0], [1], [0, 0, 1, 1], [], []>} : vector<8x128xf32>, vector<128x512xf32>, vector<8x512xf32> -> vector<8x512xf32>
    %108 = arith.addf %105, %107 : vector<8x512xf32>
    %109 = vector.extract_strided_slice %108 {offsets = [0, 0], sizes = [8, 384], strides = [1, 1]} : vector<8x512xf32> to vector<8x384xf32>
    %110 = arith.negf %109 : vector<8x384xf32>
    %111 = math.exp %110 : vector<8x384xf32>
    %cst_38 = arith.constant 1.000000e+00 : f32
    %112 = vector.broadcast %cst_38 : f32 to vector<8x384xf32>
    %113 = arith.addf %112, %111 : vector<8x384xf32>
    %114 = arith.divf %112, %113 : vector<8x384xf32>
    %115 = vector.extract_strided_slice %108 {offsets = [0, 384], sizes = [8, 128], strides = [1, 1]} : vector<8x512xf32> to vector<8x128xf32>
    %116 = math.tanh %115 : vector<8x128xf32>
    %117 = vector.extract_strided_slice %114 {offsets = [0, 0], sizes = [8, 128], strides = [1, 1]} : vector<8x384xf32> to vector<8x128xf32>
    %118 = vector.extract_strided_slice %114 {offsets = [0, 128], sizes = [8, 128], strides = [1, 1]} : vector<8x384xf32> to vector<8x128xf32>
    %119 = vector.extract_strided_slice %114 {offsets = [0, 256], sizes = [8, 128], strides = [1, 1]} : vector<8x384xf32> to vector<8x128xf32>
    %120 = arith.mulf %118, %99 : vector<8x128xf32>
    %121 = arith.mulf %117, %116 : vector<8x128xf32>
    %122 = arith.addf %120, %121 : vector<8x128xf32>
    %123 = math.tanh %122 : vector<8x128xf32>
    %124 = arith.mulf %119, %123 : vector<8x128xf32>
    %c5_i32 = arith.constant 5 : i32
    %c8_i32_39 = arith.constant 8 : i32
    %125 = arith.muli %c5_i32, %c8_i32_39 : i32
    %126 = tpu.assume_multiple %125, 8 : i32
    %127 = arith.index_cast %126 : i32 to index
    %c0_40 = arith.constant 0 : index
    %128 = vector.load %arg8[%127, %c0_40] : memref<64x512xf32, #tpu.memory_space<vmem>>, vector<8x512xf32>
    %c0_41 = arith.constant 0 : index
    %c0_42 = arith.constant 0 : index
    %129 = vector.load %arg4[%c0_41, %c0_42] : memref<128x512xf32, #tpu.memory_space<vmem>>, vector<128x512xf32>
    %cst_43 = arith.constant dense<0.000000e+00> : vector<8x512xf32>
    %130 = tpu.matmul %124, %129, %cst_43 {dimension_numbers = #tpu.dot_dimension_numbers<[1], [0], [0], [1], [0, 0, 1, 1], [], []>} : vector<8x128xf32>, vector<128x512xf32>, vector<8x512xf32> -> vector<8x512xf32>
    %131 = arith.addf %128, %130 : vector<8x512xf32>
    %132 = vector.extract_strided_slice %131 {offsets = [0, 0], sizes = [8, 384], strides = [1, 1]} : vector<8x512xf32> to vector<8x384xf32>
    %133 = arith.negf %132 : vector<8x384xf32>
    %134 = math.exp %133 : vector<8x384xf32>
    %cst_44 = arith.constant 1.000000e+00 : f32
    %135 = vector.broadcast %cst_44 : f32 to vector<8x384xf32>
    %136 = arith.addf %135, %134 : vector<8x384xf32>
    %137 = arith.divf %135, %136 : vector<8x384xf32>
    %138 = vector.extract_strided_slice %131 {offsets = [0, 384], sizes = [8, 128], strides = [1, 1]} : vector<8x512xf32> to vector<8x128xf32>
    %139 = math.tanh %138 : vector<8x128xf32>
    %140 = vector.extract_strided_slice %137 {offsets = [0, 0], sizes = [8, 128], strides = [1, 1]} : vector<8x384xf32> to vector<8x128xf32>
    %141 = vector.extract_strided_slice %137 {offsets = [0, 128], sizes = [8, 128], strides = [1, 1]} : vector<8x384xf32> to vector<8x128xf32>
    %142 = vector.extract_strided_slice %137 {offsets = [0, 256], sizes = [8, 128], strides = [1, 1]} : vector<8x384xf32> to vector<8x128xf32>
    %143 = arith.mulf %141, %122 : vector<8x128xf32>
    %144 = arith.mulf %140, %139 : vector<8x128xf32>
    %145 = arith.addf %143, %144 : vector<8x128xf32>
    %146 = math.tanh %145 : vector<8x128xf32>
    %147 = arith.mulf %142, %146 : vector<8x128xf32>
    %c6_i32 = arith.constant 6 : i32
    %c8_i32_45 = arith.constant 8 : i32
    %148 = arith.muli %c6_i32, %c8_i32_45 : i32
    %149 = tpu.assume_multiple %148, 8 : i32
    %150 = arith.index_cast %149 : i32 to index
    %c0_46 = arith.constant 0 : index
    %151 = vector.load %arg8[%150, %c0_46] : memref<64x512xf32, #tpu.memory_space<vmem>>, vector<8x512xf32>
    %c0_47 = arith.constant 0 : index
    %c0_48 = arith.constant 0 : index
    %152 = vector.load %arg4[%c0_47, %c0_48] : memref<128x512xf32, #tpu.memory_space<vmem>>, vector<128x512xf32>
    %cst_49 = arith.constant dense<0.000000e+00> : vector<8x512xf32>
    %153 = tpu.matmul %147, %152, %cst_49 {dimension_numbers = #tpu.dot_dimension_numbers<[1], [0], [0], [1], [0, 0, 1, 1], [], []>} : vector<8x128xf32>, vector<128x512xf32>, vector<8x512xf32> -> vector<8x512xf32>
    %154 = arith.addf %151, %153 : vector<8x512xf32>
    %155 = vector.extract_strided_slice %154 {offsets = [0, 0], sizes = [8, 384], strides = [1, 1]} : vector<8x512xf32> to vector<8x384xf32>
    %156 = arith.negf %155 : vector<8x384xf32>
    %157 = math.exp %156 : vector<8x384xf32>
    %cst_50 = arith.constant 1.000000e+00 : f32
    %158 = vector.broadcast %cst_50 : f32 to vector<8x384xf32>
    %159 = arith.addf %158, %157 : vector<8x384xf32>
    %160 = arith.divf %158, %159 : vector<8x384xf32>
    %161 = vector.extract_strided_slice %154 {offsets = [0, 384], sizes = [8, 128], strides = [1, 1]} : vector<8x512xf32> to vector<8x128xf32>
    %162 = math.tanh %161 : vector<8x128xf32>
    %163 = vector.extract_strided_slice %160 {offsets = [0, 0], sizes = [8, 128], strides = [1, 1]} : vector<8x384xf32> to vector<8x128xf32>
    %164 = vector.extract_strided_slice %160 {offsets = [0, 128], sizes = [8, 128], strides = [1, 1]} : vector<8x384xf32> to vector<8x128xf32>
    %165 = vector.extract_strided_slice %160 {offsets = [0, 256], sizes = [8, 128], strides = [1, 1]} : vector<8x384xf32> to vector<8x128xf32>
    %166 = arith.mulf %164, %145 : vector<8x128xf32>
    %167 = arith.mulf %163, %162 : vector<8x128xf32>
    %168 = arith.addf %166, %167 : vector<8x128xf32>
    %169 = math.tanh %168 : vector<8x128xf32>
    %170 = arith.mulf %165, %169 : vector<8x128xf32>
    %c7_i32 = arith.constant 7 : i32
    %c8_i32_51 = arith.constant 8 : i32
    %171 = arith.muli %c7_i32, %c8_i32_51 : i32
    %172 = tpu.assume_multiple %171, 8 : i32
    %173 = arith.index_cast %172 : i32 to index
    %c0_52 = arith.constant 0 : index
    %174 = vector.load %arg8[%173, %c0_52] : memref<64x512xf32, #tpu.memory_space<vmem>>, vector<8x512xf32>
    %c0_53 = arith.constant 0 : index
    %c0_54 = arith.constant 0 : index
    %175 = vector.load %arg4[%c0_53, %c0_54] : memref<128x512xf32, #tpu.memory_space<vmem>>, vector<128x512xf32>
    %cst_55 = arith.constant dense<0.000000e+00> : vector<8x512xf32>
    %176 = tpu.matmul %170, %175, %cst_55 {dimension_numbers = #tpu.dot_dimension_numbers<[1], [0], [0], [1], [0, 0, 1, 1], [], []>} : vector<8x128xf32>, vector<128x512xf32>, vector<8x512xf32> -> vector<8x512xf32>
    %177 = arith.addf %174, %176 : vector<8x512xf32>
    %178 = vector.extract_strided_slice %177 {offsets = [0, 0], sizes = [8, 384], strides = [1, 1]} : vector<8x512xf32> to vector<8x384xf32>
    %179 = arith.negf %178 : vector<8x384xf32>
    %180 = math.exp %179 : vector<8x384xf32>
    %cst_56 = arith.constant 1.000000e+00 : f32
    %181 = vector.broadcast %cst_56 : f32 to vector<8x384xf32>
    %182 = arith.addf %181, %180 : vector<8x384xf32>
    %183 = arith.divf %181, %182 : vector<8x384xf32>
    %184 = vector.extract_strided_slice %177 {offsets = [0, 384], sizes = [8, 128], strides = [1, 1]} : vector<8x512xf32> to vector<8x128xf32>
    %185 = math.tanh %184 : vector<8x128xf32>
    %186 = vector.extract_strided_slice %183 {offsets = [0, 0], sizes = [8, 128], strides = [1, 1]} : vector<8x384xf32> to vector<8x128xf32>
    %187 = vector.extract_strided_slice %183 {offsets = [0, 128], sizes = [8, 128], strides = [1, 1]} : vector<8x384xf32> to vector<8x128xf32>
    %188 = vector.extract_strided_slice %183 {offsets = [0, 256], sizes = [8, 128], strides = [1, 1]} : vector<8x384xf32> to vector<8x128xf32>
    %189 = arith.mulf %187, %168 : vector<8x128xf32>
    %190 = arith.mulf %186, %185 : vector<8x128xf32>
    %191 = arith.addf %189, %190 : vector<8x128xf32>
    %192 = math.tanh %191 : vector<8x128xf32>
    %193 = arith.mulf %188, %192 : vector<8x128xf32>
    %c8_i32_57 = arith.constant 8 : i32
    %c0_58 = arith.constant 0 : index
    %c0_59 = arith.constant 0 : index
    %194 = vector.load %arg5[%c0_58, %c0_59] : memref<128x128xf32, #tpu.memory_space<vmem>>, vector<128x128xf32>
    %cst_60 = arith.constant dense<0.000000e+00> : vector<8x128xf32>
    %195 = tpu.matmul %193, %194, %cst_60 {dimension_numbers = #tpu.dot_dimension_numbers<[1], [0], [0], [1], [0, 0, 1, 1], [], []>} : vector<8x128xf32>, vector<128x128xf32>, vector<8x128xf32> -> vector<8x128xf32>
    %c0_61 = arith.constant 0 : index
    %c0_62 = arith.constant 0 : index
    %196 = vector.load %arg6[%c0_61, %c0_62] : memref<1x128xf32, #tpu.memory_space<vmem>>, vector<1x128xf32>
    %197 = vector.broadcast %196 : vector<1x128xf32> to vector<8x128xf32>
    %198 = arith.addf %195, %197 : vector<8x128xf32>
    %c0_63 = arith.constant 0 : index
    %c0_64 = arith.constant 0 : index
    %199 = vector.load %arg7[%c0_63, %c0_64] : memref<8x128xf32, #tpu.memory_space<vmem>>, vector<8x128xf32>
    tpu.vector_store %arg7[%c0_63, %c0_64], %198 {strides = array<i32>} : memref<8x128xf32, #tpu.memory_space<vmem>>, vector<8x128xf32>,
    return
  }
  func.func @transform_0(%arg0: i32) -> (i32, i32, i32) {
    %c0_i32 = arith.constant 0 : i32
    %c0_i32_0 = arith.constant 0 : i32
    %c0_i32_1 = arith.constant 0 : i32
    return %arg0, %c0_i32, %c0_i32_0 : i32, i32, i32
  }
  func.func @transform_1(%arg0: i32) -> (i32, i32) {
    %c0_i32 = arith.constant 0 : i32
    %c0_i32_0 = arith.constant 0 : i32
    %c0_i32_1 = arith.constant 0 : i32
    return %c0_i32, %c0_i32_0 : i32, i32
  }
  func.func @transform_2(%arg0: i32) -> (i32, i32) {
    %c0_i32 = arith.constant 0 : i32
    %c0_i32_0 = arith.constant 0 : i32
    %c0_i32_1 = arith.constant 0 : i32
    return %c0_i32, %c0_i32_0 : i32, i32
  }
  func.func @transform_3(%arg0: i32) -> (i32, i32) {
    %c0_i32 = arith.constant 0 : i32
    %c0_i32_0 = arith.constant 0 : i32
    %c0_i32_1 = arith.constant 0 : i32
    return %c0_i32, %c0_i32_0 : i32, i32
  }
  func.func @transform_4(%arg0: i32) -> (i32, i32) {
    %c0_i32 = arith.constant 0 : i32
    %c0_i32_0 = arith.constant 0 : i32
    %c0_i32_1 = arith.constant 0 : i32
    return %c0_i32, %c0_i32_0 : i32, i32
  }
  func.func @transform_5(%arg0: i32) -> (i32, i32) {
    %c0_i32 = arith.constant 0 : i32
    %c0_i32_0 = arith.constant 0 : i32
    %c0_i32_1 = arith.constant 0 : i32
    return %c0_i32, %c0_i32_0 : i32, i32
  }
  func.func @transform_6(%arg0: i32) -> (i32, i32) {
    %c0_i32 = arith.constant 0 : i32
    %c0_i32_0 = arith.constant 0 : i32
    return %arg0, %c0_i32 : i32, i32
  }
}

</mosaic_0001>

<llo_original>
// kernel: tpu_custom_call.1
$region0: #{tpu_custom_call.1}
  #allocation0 [shape = 'u32[]', space=smem, size = 0x4, offset = 0x4, fixed_abs, tag = 'smem constant byte address 0x4 - core index']
  #allocation1 [shape = 'u32[144,128]{1,0:T(1,128)}', space=vmem, size = 0x12000, scoped, tag = 'internal scratch']
  #allocation2 [shape = 'f32[64,512]{1,0:T(8,128)}', space=vmem, size = 0x20000, scoped, tag = 'scratch operand']
  %s0 = inlined_call_operand.vmem [shape: f32[1,64,32], index: 0, kind: input, shape index: {}]
  %s1 = inlined_call_operand.hbm [shape: f32[32,512], index: 1, kind: input, shape index: {}]
  %s2 = inlined_call_operand.vmem [shape: f32[1,512], index: 2, kind: input, shape index: {}]
  %s3 = inlined_call_operand.hbm [shape: f32[128,512], index: 3, kind: input, shape index: {}]
  %s4 = inlined_call_operand.hbm [shape: f32[128,128], index: 4, kind: input, shape index: {}]
  %s5 = inlined_call_operand.vmem [shape: f32[1,128], index: 5, kind: input, shape index: {}]
  %s6 = inlined_call_operand.hbm [shape: f32[8,128], index: 6, kind: output, shape index: {}]
  %s7 = sld [smem:[#allocation0]]
  $region46: #{tpu_custom_call.1} parent=0
    _
  %s9 = ssub.s32 1, %s7
  %s10 = scalar_select 0, %s9, %s7
  $region1: #{tpu_custom_call.1} parent=0
    #allocation3 [shape = 'u8[65536]{0}', space=vmem, size = 0x10000, scoped, tag = 'input window, operand 1, single buffered']
    #allocation4 [shape = 's32[1]{0}', space=sflag, size = 0x4, scoped, tag = 'scoped memory for tpu_custom_call.1']
    #allocation5 [shape = 's32[1]{0}', space=sflag, size = 0x4, scoped, tag = 'scoped memory for tpu_custom_call.1']
    #allocation6 [shape = 'u8[262144]{0}', space=vmem, size = 0x40000, scoped, tag = 'input window, operand 3, single buffered']
    #allocation7 [shape = 's32[1]{0}', space=sflag, size = 0x4, scoped, tag = 'scoped memory for tpu_custom_call.1']
    #allocation8 [shape = 'u8[65536]{0}', space=vmem, size = 0x10000, scoped, tag = 'input window, operand 4, single buffered']
    #allocation9 [shape = 'u8[4096]{0}', space=vmem, size = 0x1000, scoped, tag = 'output window, operand 0, single buffered']
    %11 = vsyncpa [#allocation4], 0
    %12 = vsyncpa [#allocation7], 0
    %13 = vsyncpa [#allocation5], 0
    // Predicated region
    $region2: #{tpu_custom_call.1} parent=1 // pred_check
      _
    $region3: #{tpu_custom_call.1} parent=1 // pred_check_branch
      %15 = sbr.rel (0) target = $region5
    $region4: #{tpu_custom_call.1} parent=1 // pred_region
      _
    $region5: #{tpu_custom_call.1} parent=1 // pred_fallthru
      _
    // Predicated region
    $region6: #{tpu_custom_call.1} parent=1 // pred_check
      _
    $region7: #{tpu_custom_call.1} parent=1 // pred_check_branch
      %17 = sbr.rel (0) target = $region9
    $region8: #{tpu_custom_call.1} parent=1 // pred_region
      %s19 = ssub.s32 2048, 2048
      %20 = vsyncadd [#allocation4], %s19
      %s21 = sshll.u32 [#allocation3], 4
      %s22 = int_to_ptr.vmem [resolvable:$true] %s21
      %27 = dma.hbm_to_vmem [thread:$0]  %s1, 2048, %s22, [#allocation4], 512, 512, 32
    $region9: #{tpu_custom_call.1} parent=1 // pred_fallthru
      _
    // Predicated region
    $region10: #{tpu_custom_call.1} parent=1 // pred_check
      _
    $region11: #{tpu_custom_call.1} parent=1 // pred_check_branch
      %29 = sbr.rel (0) target = $region13
    $region12: #{tpu_custom_call.1} parent=1 // pred_region
      _
    $region13: #{tpu_custom_call.1} parent=1 // pred_fallthru
      _
    // Predicated region
    $region14: #{tpu_custom_call.1} parent=1 // pred_check
      _
    $region15: #{tpu_custom_call.1} parent=1 // pred_check_branch
      %31 = sbr.rel (0) target = $region17
    $region16: #{tpu_custom_call.1} parent=1 // pred_region
      %s33 = ssub.s32 8192, 8192
      %34 = vsyncadd [#allocation7], %s33
      %s35 = sshll.u32 [#allocation6], 4
      %s36 = int_to_ptr.vmem [resolvable:$true] %s35
      %41 = dma.hbm_to_vmem [thread:$0]  %s3, 8192, %s36, [#allocation7], 512, 512, 32
    $region17: #{tpu_custom_call.1} parent=1 // pred_fallthru
      _
    // Predicated region
    $region18: #{tpu_custom_call.1} parent=1 // pred_check
      _
    $region19: #{tpu_custom_call.1} parent=1 // pred_check_branch
      %43 = sbr.rel (0) target = $region21
    $region20: #{tpu_custom_call.1} parent=1 // pred_region
      %s45 = ssub.s32 2048, 2048
      %46 = vsyncadd [#allocation7], %s45
      %s47 = sshll.u32 [#allocation8], 4
      %s48 = int_to_ptr.vmem [resolvable:$true] %s47
      %53 = dma.hbm_to_vmem [thread:$0]  %s4, 2048, %s48, [#allocation7], 128, 128, 8
    $region21: #{tpu_custom_call.1} parent=1 // pred_fallthru
      _
    // Predicated region
    $region22: #{tpu_custom_call.1} parent=1 // pred_check
      _
    $region23: #{tpu_custom_call.1} parent=1 // pred_check_branch
      %55 = sbr.rel (0) target = $region25
    $region24: #{tpu_custom_call.1} parent=1 // pred_region
      _
    $region25: #{tpu_custom_call.1} parent=1 // pred_fallthru
      _
    // Predicated region
    $region26: #{tpu_custom_call.1} parent=1 // pred_check
      _
    $region27: #{tpu_custom_call.1} parent=1 // pred_check_branch
      %57 = sbr.rel (0) target = $region29
    $region28: #{tpu_custom_call.1} parent=1 // pred_region
      %58 = dma.done [#allocation4], 2048
    $region29: #{tpu_custom_call.1} parent=1 // pred_fallthru
      _
    // Predicated region
    $region30: #{tpu_custom_call.1} parent=1 // pred_check
      _
    $region31: #{tpu_custom_call.1} parent=1 // pred_check_branch
      %60 = sbr.rel (0) target = $region33
    $region32: #{tpu_custom_call.1} parent=1 // pred_region
      %61 = dma.done [#allocation7], 8192
    $region33: #{tpu_custom_call.1} parent=1 // pred_fallthru
      _
    // Predicated region
    $region34: #{tpu_custom_call.1} parent=1 // pred_check
      _
    $region35: #{tpu_custom_call.1} parent=1 // pred_check_branch
      %63 = sbr.rel (0) target = $region37
    $region36: #{tpu_custom_call.1} parent=1 // pred_region
      %64 = dma.done [#allocation7], 2048
    $region37: #{tpu_custom_call.1} parent=1 // pred_fallthru
      _
    %v65 = vld [vmem:[%s0] sm:$0xff]
    %v66 = vld [vmem:[%s0 + $0x8] sm:$0xff]
    %v67 = vld [vmem:[%s0 + $0x10] sm:$0xff]
    %v68 = vld [vmem:[%s0 + $0x18] sm:$0xff]
    %v69 = vld [vmem:[%s0 + $0x20] sm:$0xff]
    %v70 = vld [vmem:[%s0 + $0x28] sm:$0xff]
    %v71 = vld [vmem:[%s0 + $0x30] sm:$0xff]
    %v72 = vld [vmem:[%s0 + $0x38] sm:$0xff]
    %v73 = vld [vmem:[#allocation3] sm:$0xff]
    %v74 = vld [vmem:[#allocation3 + $0x8] sm:$0xff]
    %v75 = vld [vmem:[#allocation3 + $0x10] sm:$0xff]
    %v76 = vld [vmem:[#allocation3 + $0x18] sm:$0xff]
    %v77 = vld [vmem:[#allocation3 + $0x20] sm:$0xff]
    %v78 = vld [vmem:[#allocation3 + $0x28] sm:$0xff]
    %v79 = vld [vmem:[#allocation3 + $0x30] sm:$0xff]
    %v80 = vld [vmem:[#allocation3 + $0x38] sm:$0xff]
    %v81 = vld [vmem:[#allocation3 + $0x40] sm:$0xff]
    %v82 = vld [vmem:[#allocation3 + $0x48] sm:$0xff]
    %v83 = vld [vmem:[#allocation3 + $0x50] sm:$0xff]
    %v84 = vld [vmem:[#allocation3 + $0x58] sm:$0xff]
    %v85 = vld [vmem:[#allocation3 + $0x60] sm:$0xff]
    %v86 = vld [vmem:[#allocation3 + $0x68] sm:$0xff]
    %v87 = vld [vmem:[#allocation3 + $0x70] sm:$0xff]
    %v88 = vld [vmem:[#allocation3 + $0x78] sm:$0xff]
    %v89 = vld [vmem:[%s2] sm:$0xf]
    %v91 = vlaneseq
    %v92 = vshrl.u32 %v91, 7
    %v93 = vsub.s32 0, %v92
    %v94 = vrot.slane %v89, %v93
    %v95 = vlaneseq
    %v96 = vshrl.u32 %v95, 7
    %v97 = vsub.s32 1, %v96
    %v98 = vrot.slane %v89, %v97
    %v99 = vlaneseq
    %v100 = vshrl.u32 %v99, 7
    %v101 = vsub.s32 2, %v100
    %v102 = vrot.slane %v89, %v101
    %v103 = vlaneseq
    %v104 = vshrl.u32 %v103, 7
    %v105 = vsub.s32 3, %v104
    %v106 = vrot.slane %v89, %v105
    %vm111 = vcmask 261120
    %v113 = vsel %vm111, %v65, 0
    %v116 = vsel %vm111, %v66, 0
    %v119 = vsel %vm111, %v67, 0
    %v122 = vsel %vm111, %v68, 0
    %v125 = vsel %vm111, %v69, 0
    %v128 = vsel %vm111, %v70, 0
    %v131 = vsel %vm111, %v71, 0
    %v134 = vsel %vm111, %v72, 0
    %136 = vmatprep.subr.mxu0 %v74
    %137 = vmatpush1.msra.mxu0 %v73
    %138 = vmatprep.subr.mxu0 %v78
    %139 = vmatpush1.msra.mxu0 %v77
    %140 = vmatprep.subr.mxu0 %v82
    %141 = vmatpush1.msra.mxu0 %v81
    %142 = vmatprep.subr.mxu0 %v86
    %143 = vmatpush1.msra.mxu0 %v85
    %144 = vmatprep.subr.mxu0 0.0
    %145 = vmatpush1.msra.mxu0 0.0
    %146 = vmatprep.subr.mxu0 0.0
    %147 = vmatpush1.msra.mxu0 0.0
    %148 = vmatprep.subr.mxu0 0.0
    %149 = vmatpush1.msra.mxu0 0.0
    %150 = vmatprep.subr.mxu0 0.0
    %151 = vmatpush1.msra.mxu0 0.0
    %152 = vmatprep.subr.mxu0 0.0
    %153 = vmatpush1.msra.mxu0 0.0
    %154 = vmatprep.subr.mxu0 0.0
    %155 = vmatpush1.msra.mxu0 0.0
    %156 = vmatprep.subr.mxu0 0.0
    %157 = vmatpush1.msra.mxu0 0.0
    %158 = vmatprep.subr.mxu0 0.0
    %159 = vmatpush1.msra.mxu0 0.0
    %160 = vmatprep.subr.mxu0 0.0
    %161 = vmatpush1.msra.mxu0 0.0
    %162 = vmatprep.subr.mxu0 0.0
    %163 = vmatpush1.msra.mxu0 0.0
    %164 = vmatprep.subr.mxu0 0.0
    %165 = vmatpush1.msra.mxu0 0.0
    %166 = vmatprep.subr.mxu0 0.0
    %167 = vmatpush1.msra.mxu0 0.0
    %168 = vmatprep.subr.mxu0 0.0
    %169 = vmatpush1.msra.mxu0 0.0
    %170 = vmatprep.subr.mxu0 0.0
    %171 = vmatpush1.msra.mxu0 0.0
    %172 = vmatprep.subr.mxu0 0.0
    %173 = vmatpush1.msra.mxu0 0.0
    %174 = vmatprep.subr.mxu0 0.0
    %175 = vmatpush1.msra.mxu0 0.0
    %176 = vmatprep.subr.mxu0 0.0
    %177 = vmatpush1.msra.mxu0 0.0
    %178 = vmatprep.subr.mxu0 0.0
    %179 = vmatpush1.msra.mxu0 0.0
    %180 = vmatprep.subr.mxu0 0.0
    %181 = vmatpush1.msra.mxu0 0.0
    %182 = vmatprep.subr.mxu0 0.0
    %183 = vmatpush1.msra.mxu0 0.0
    %184 = vmatprep.subr.mxu0 0.0
    %185 = vmatpush1.msra.mxu0 0.0
    %186 = vmatprep.subr.mxu0 0.0
    %187 = vmatpush1.msra.mxu0 0.0
    %188 = vmatprep.subr.mxu0 0.0
    %189 = vmatpush1.msra.mxu0 0.0
    %190 = vmatprep.subr.mxu0 0.0
    %191 = vmatpush1.msra.mxu0 0.0
    %192 = vmatprep.subr.mxu0 0.0
    %193 = vmatpush1.msra.mxu0 0.0
    %194 = vmatprep.subr.mxu0 0.0
    %195 = vmatpush1.msra.mxu0 0.0
    %196 = vmatprep.subr.mxu0 0.0
    %197 = vmatpush1.msra.mxu0 0.0
    %198 = vmatprep.subr.mxu0 0.0
    %199 = vmatpush1.msra.mxu0 0.0
    %200 = vmatprep.mubr.f32.mxu0 0.0
    %201 = vmatmul.mubr.f32.gmra.mrb[0].mxu0 %v113
    %v202 = vpop.f32.mrb[0].mxu0
    %v203 = vadd.f32 %v94, %v202
    %v204 = vpop.f32.mrb[0].mxu0
    %v205 = vadd.f32 %v98, %v204
    %206 = vmatprep.mubr.f32.mxu0 0.0
    %207 = vmatmul.mubr.f32.gmra.mrb[0].mxu0 %v116
    %v208 = vpop.f32.mrb[0].mxu0
    %v209 = vadd.f32 %v94, %v208
    %v210 = vpop.f32.mrb[0].mxu0
    %v211 = vadd.f32 %v98, %v210
    %212 = vmatprep.mubr.f32.mxu0 0.0
    %213 = vmatmul.mubr.f32.gmra.mrb[0].mxu0 %v119
    %v214 = vpop.f32.mrb[0].mxu0
    %v215 = vadd.f32 %v94, %v214
    %v216 = vpop.f32.mrb[0].mxu0
    %v217 = vadd.f32 %v98, %v216
    %218 = vmatprep.mubr.f32.mxu0 0.0
    %219 = vmatmul.mubr.f32.gmra.mrb[0].mxu0 %v122
    %v220 = vpop.f32.mrb[0].mxu0
    %v221 = vadd.f32 %v94, %v220
    %v222 = vpop.f32.mrb[0].mxu0
    %v223 = vadd.f32 %v98, %v222
    %224 = vmatprep.mubr.f32.mxu0 0.0
    %225 = vmatmul.mubr.f32.gmra.mrb[0].mxu0 %v125
    %v226 = vpop.f32.mrb[0].mxu0
    %v227 = vadd.f32 %v94, %v226
    %v228 = vpop.f32.mrb[0].mxu0
    %v229 = vadd.f32 %v98, %v228
    %230 = vmatprep.mubr.f32.mxu0 0.0
    %231 = vmatmul.mubr.f32.gmra.mrb[0].mxu0 %v128
    %v232 = vpop.f32.mrb[0].mxu0
    %v233 = vadd.f32 %v94, %v232
    %v234 = vpop.f32.mrb[0].mxu0
    %v235 = vadd.f32 %v98, %v234
    %236 = vmatprep.mubr.f32.mxu0 0.0
    %237 = vmatmul.mubr.f32.gmra.mrb[0].mxu0 %v131
    %v238 = vpop.f32.mrb[0].mxu0
    %v239 = vadd.f32 %v94, %v238
    %v240 = vpop.f32.mrb[0].mxu0
    %v241 = vadd.f32 %v98, %v240
    %242 = vmatprep.mubr.f32.mxu0 0.0
    %243 = vmatmul.mubr.f32.gmra.mrb[0].mxu0 %v134
    %v244 = vpop.f32.mrb[0].mxu0
    %v245 = vadd.f32 %v94, %v244
    %v246 = vpop.f32.mrb[0].mxu0
    %v247 = vadd.f32 %v98, %v246
    %248 = vdwg.mxu0
    %249 = vmatprep.subr.mxu0 %v76
    %250 = vmatpush1.msra.mxu0 %v75
    %251 = vmatprep.subr.mxu0 %v80
    %252 = vmatpush1.msra.mxu0 %v79
    %253 = vmatprep.subr.mxu0 %v84
    %254 = vmatpush1.msra.mxu0 %v83
    %255 = vmatprep.subr.mxu0 %v88
    %256 = vmatpush1.msra.mxu0 %v87
    %257 = vmatprep.subr.mxu0 0.0
    %258 = vmatpush1.msra.mxu0 0.0
    %259 = vmatprep.subr.mxu0 0.0
    %260 = vmatpush1.msra.mxu0 0.0
    %261 = vmatprep.subr.mxu0 0.0
    %262 = vmatpush1.msra.mxu0 0.0
    %263 = vmatprep.subr.mxu0 0.0
    %264 = vmatpush1.msra.mxu0 0.0
    %265 = vmatprep.subr.mxu0 0.0
    %266 = vmatpush1.msra.mxu0 0.0
    %267 = vmatprep.subr.mxu0 0.0
    %268 = vmatpush1.msra.mxu0 0.0
    %269 = vmatprep.subr.mxu0 0.0
    %270 = vmatpush1.msra.mxu0 0.0
    %271 = vmatprep.subr.mxu0 0.0
    %272 = vmatpush1.msra.mxu0 0.0
    %273 = vmatprep.subr.mxu0 0.0
    %274 = vmatpush1.msra.mxu0 0.0
    %275 = vmatprep.subr.mxu0 0.0
    %276 = vmatpush1.msra.mxu0 0.0
    %277 = vmatprep.subr.mxu0 0.0
    %278 = vmatpush1.msra.mxu0 0.0
    %279 = vmatprep.subr.mxu0 0.0
    %280 = vmatpush1.msra.mxu0 0.0
    %281 = vmatprep.subr.mxu0 0.0
    %282 = vmatpush1.msra.mxu0 0.0
    %283 = vmatprep.subr.mxu0 0.0
    %284 = vmatpush1.msra.mxu0 0.0
    %285 = vmatprep.subr.mxu0 0.0
    %286 = vmatpush1.msra.mxu0 0.0
    %287 = vmatprep.subr.mxu0 0.0
    %288 = vmatpush1.msra.mxu0 0.0
    %289 = vmatprep.subr.mxu0 0.0
    %290 = vmatpush1.msra.mxu0 0.0
    %291 = vmatprep.subr.mxu0 0.0
    %292 = vmatpush1.msra.mxu0 0.0
    %293 = vmatprep.subr.mxu0 0.0
    %294 = vmatpush1.msra.mxu0 0.0
    %295 = vmatprep.subr.mxu0 0.0
    %296 = vmatpush1.msra.mxu0 0.0
    %297 = vmatprep.subr.mxu0 0.0
    %298 = vmatpush1.msra.mxu0 0.0
    %299 = vmatprep.subr.mxu0 0.0
    %300 = vmatpush1.msra.mxu0 0.0
    %301 = vmatprep.subr.mxu0 0.0
    %302 = vmatpush1.msra.mxu0 0.0
    %303 = vmatprep.subr.mxu0 0.0
    %304 = vmatpush1.msra.mxu0 0.0
    %305 = vmatprep.subr.mxu0 0.0
    %306 = vmatpush1.msra.mxu0 0.0
    %307 = vmatprep.subr.mxu0 0.0
    %308 = vmatpush1.msra.mxu0 0.0
    %309 = vmatprep.subr.mxu0 0.0
    %310 = vmatpush1.msra.mxu0 0.0
    %311 = vmatprep.subr.mxu0 0.0
    %312 = vmatpush1.msra.mxu0 0.0
    %313 = vmatprep.mubr.f32.mxu0 0.0
    %314 = vmatmul.mubr.f32.gmra.mrb[0].mxu0 %v113
    %v315 = vpop.f32.mrb[0].mxu0
    %v316 = vadd.f32 %v102, %v315
    %v317 = vpop.f32.mrb[0].mxu0
    %v318 = vadd.f32 %v106, %v317
    %319 = vmatprep.mubr.f32.mxu0 0.0
    %320 = vmatmul.mubr.f32.gmra.mrb[0].mxu0 %v116
    %v321 = vpop.f32.mrb[0].mxu0
    %v322 = vadd.f32 %v102, %v321
    %v323 = vpop.f32.mrb[0].mxu0
    %v324 = vadd.f32 %v106, %v323
    %325 = vmatprep.mubr.f32.mxu0 0.0
    %326 = vmatmul.mubr.f32.gmra.mrb[0].mxu0 %v119
    %v327 = vpop.f32.mrb[0].mxu0
    %v328 = vadd.f32 %v102, %v327
    %v329 = vpop.f32.mrb[0].mxu0
    %v330 = vadd.f32 %v106, %v329
    %331 = vmatprep.mubr.f32.mxu0 0.0
    %332 = vmatmul.mubr.f32.gmra.mrb[0].mxu0 %v122
    %v333 = vpop.f32.mrb[0].mxu0
    %v334 = vadd.f32 %v102, %v333
    %v335 = vpop.f32.mrb[0].mxu0
    %v336 = vadd.f32 %v106, %v335
    %337 = vmatprep.mubr.f32.mxu0 0.0
    %338 = vmatmul.mubr.f32.gmra.mrb[0].mxu0 %v125
    %v339 = vpop.f32.mrb[0].mxu0
    %v340 = vadd.f32 %v102, %v339
    %v341 = vpop.f32.mrb[0].mxu0
    %v342 = vadd.f32 %v106, %v341
    %343 = vmatprep.mubr.f32.mxu0 0.0
    %344 = vmatmul.mubr.f32.gmra.mrb[0].mxu0 %v128
    %v345 = vpop.f32.mrb[0].mxu0
    %v346 = vadd.f32 %v102, %v345
    %v347 = vpop.f32.mrb[0].mxu0
    %v348 = vadd.f32 %v106, %v347
    %349 = vmatprep.mubr.f32.mxu0 0.0
    %350 = vmatmul.mubr.f32.gmra.mrb[0].mxu0 %v131
    %v351 = vpop.f32.mrb[0].mxu0
    %v352 = vadd.f32 %v102, %v351
    %v353 = vpop.f32.mrb[0].mxu0
    %v354 = vadd.f32 %v106, %v353
    %355 = vmatprep.mubr.f32.mxu0 0.0
    %356 = vmatmul.mubr.f32.gmra.mrb[0].mxu0 %v134
    %v357 = vpop.f32.mrb[0].mxu0
    %v358 = vadd.f32 %v102, %v357
    %v359 = vpop.f32.mrb[0].mxu0
    %v360 = vadd.f32 %v106, %v359
    %361 = vdwg.mxu0
    %362 = vst [vmem:[#allocation2] sm:$0xff] %v203
    %363 = vst [vmem:[#allocation2 + $0x8] sm:$0xff] %v205
    %364 = vst [vmem:[#allocation2 + $0x10] sm:$0xff] %v316
    %365 = vst [vmem:[#allocation2 + $0x18] sm:$0xff] %v318
    %366 = vst [vmem:[#allocation2 + $0x20] sm:$0xff] %v209
    %367 = vst [vmem:[#allocation2 + $0x28] sm:$0xff] %v211
    %368 = vst [vmem:[#allocation2 + $0x30] sm:$0xff] %v322
    %369 = vst [vmem:[#allocation2 + $0x38] sm:$0xff] %v324
    %370 = vst [vmem:[#allocation2 + $0x40] sm:$0xff] %v215
    %371 = vst [vmem:[#allocation2 + $0x48] sm:$0xff] %v217
    %372 = vst [vmem:[#allocation2 + $0x50] sm:$0xff] %v328
    %373 = vst [vmem:[#allocation2 + $0x58] sm:$0xff] %v330
    %374 = vst [vmem:[#allocation2 + $0x60] sm:$0xff] %v221
    %375 = vst [vmem:[#allocation2 + $0x68] sm:$0xff] %v223
    %376 = vst [vmem:[#allocation2 + $0x70] sm:$0xff] %v334
    %377 = vst [vmem:[#allocation2 + $0x78] sm:$0xff] %v336
    %378 = vst [vmem:[#allocation2 + $0x80] sm:$0xff] %v227
    %379 = vst [vmem:[#allocation2 + $0x88] sm:$0xff] %v229
    %380 = vst [vmem:[#allocation2 + $0x90] sm:$0xff] %v340
    %381 = vst [vmem:[#allocation2 + $0x98] sm:$0xff] %v342
    %382 = vst [vmem:[#allocation2 + $0xa0] sm:$0xff] %v233
    %383 = vst [vmem:[#allocation2 + $0xa8] sm:$0xff] %v235
    %384 = vst [vmem:[#allocation2 + $0xb0] sm:$0xff] %v346
    %385 = vst [vmem:[#allocation2 + $0xb8] sm:$0xff] %v348
    %386 = vst [vmem:[#allocation2 + $0xc0] sm:$0xff] %v239
    %387 = vst [vmem:[#allocation2 + $0xc8] sm:$0xff] %v241
    %388 = vst [vmem:[#allocation2 + $0xd0] sm:$0xff] %v352
    %389 = vst [vmem:[#allocation2 + $0xd8] sm:$0xff] %v354
    %390 = vst [vmem:[#allocation2 + $0xe0] sm:$0xff] %v245
    %391 = vst [vmem:[#allocation2 + $0xe8] sm:$0xff] %v247
    %392 = vst [vmem:[#allocation2 + $0xf0] sm:$0xff] %v358
    %393 = vst [vmem:[#allocation2 + $0xf8] sm:$0xff] %v360
    %s394 = smul.u32 0, 4
    %s395 = smul.addr %s394, 8
    %s396 = scalar_lea.vmem [#allocation2], %s395
    %v397 = vld [vmem:[%s396] sm:$0xff]
    %v398 = vld [vmem:[%s396 + $0x8] sm:$0xff]
    %v399 = vld [vmem:[%s396 + $0x10] sm:$0xff]
    %v400 = vld [vmem:[%s396 + $0x18] sm:$0xff]
    %v401 = vld [vmem:[#allocation6] sm:$0xff]
    %v402 = vld [vmem:[#allocation6 + $0x8] sm:$0xff]
    %v403 = vld [vmem:[#allocation6 + $0x10] sm:$0xff]
    %v404 = vld [vmem:[#allocation6 + $0x18] sm:$0xff]
    %v405 = vld [vmem:[#allocation6 + $0x20] sm:$0xff]
    %v406 = vld [vmem:[#allocation6 + $0x28] sm:$0xff]
    %v407 = vld [vmem:[#allocation6 + $0x30] sm:$0xff]
    %v408 = vld [vmem:[#allocation6 + $0x38] sm:$0xff]
    %v409 = vld [vmem:[#allocation6 + $0x40] sm:$0xff]
    %v410 = vld [vmem:[#allocation6 + $0x48] sm:$0xff]
    %v411 = vld [vmem:[#allocation6 + $0x50] sm:$0xff]
    %v412 = vld [vmem:[#allocation6 + $0x58] sm:$0xff]
    %v413 = vld [vmem:[#allocation6 + $0x60] sm:$0xff]
    %v414 = vld [vmem:[#allocation6 + $0x68] sm:$0xff]
    %v415 = vld [vmem:[#allocation6 + $0x70] sm:$0xff]
    %v416 = vld [vmem:[#allocation6 + $0x78] sm:$0xff]
    %v417 = vld [vmem:[#allocation6 + $0x80] sm:$0xff]
    %v418 = vld [vmem:[#allocation6 + $0x88] sm:$0xff]
    %v419 = vld [vmem:[#allocation6 + $0x90] sm:$0xff]
    %v420 = vld [vmem:[#allocation6 + $0x98] sm:$0xff]
    %v421 = vld [vmem:[#allocation6 + $0xa0] sm:$0xff]
    %v422 = vld [vmem:[#allocation6 + $0xa8] sm:$0xff]
    %v423 = vld [vmem:[#allocation6 + $0xb0] sm:$0xff]
    %v424 = vld [vmem:[#allocation6 + $0xb8] sm:$0xff]
    %v425 = vld [vmem:[#allocation6 + $0xc0] sm:$0xff]
    %v426 = vld [vmem:[#allocation6 + $0xc8] sm:$0xff]
    %v427 = vld [vmem:[#allocation6 + $0xd0] sm:$0xff]
    %v428 = vld [vmem:[#allocation6 + $0xd8] sm:$0xff]
    %v429 = vld [vmem:[#allocation6 + $0xe0] sm:$0xff]
    %v430 = vld [vmem:[#allocation6 + $0xe8] sm:$0xff]
    %v431 = vld [vmem:[#allocation6 + $0xf0] sm:$0xff]
    %v432 = vld [vmem:[#allocation6 + $0xf8] sm:$0xff]
    %v433 = vld [vmem:[#allocation6 + $0x100] sm:$0xff]
    %v434 = vld [vmem:[#allocation6 + $0x108] sm:$0xff]
    %v435 = vld [vmem:[#allocation6 + $0x110] sm:$0xff]
    %v436 = vld [vmem:[#allocation6 + $0x118] sm:$0xff]
    %v437 = vld [vmem:[#allocation6 + $0x120] sm:$0xff]
    %v438 = vld [vmem:[#allocation6 + $0x128] sm:$0xff]
    %v439 = vld [vmem:[#allocation6 + $0x130] sm:$0xff]
    %v440 = vld [vmem:[#allocation6 + $0x138] sm:$0xff]
    %v441 = vld [vmem:[#allocation6 + $0x140] sm:$0xff]
    %v442 = vld [vmem:[#allocation6 + $0x148] sm:$0xff]
    %v443 = vld [vmem:[#allocation6 + $0x150] sm:$0xff]
    %v444 = vld [vmem:[#allocation6 + $0x158] sm:$0xff]
    %v445 = vld [vmem:[#allocation6 + $0x160] sm:$0xff]
    %v446 = vld [vmem:[#allocation6 + $0x168] sm:$0xff]
    %v447 = vld [vmem:[#allocation6 + $0x170] sm:$0xff]
    %v448 = vld [vmem:[#allocation6 + $0x178] sm:$0xff]
    %v449 = vld [vmem:[#allocation6 + $0x180] sm:$0xff]
    %v450 = vld [vmem:[#allocation6 + $0x188] sm:$0xff]
    %v451 = vld [vmem:[#allocation6 + $0x190] sm:$0xff]
    %v452 = vld [vmem:[#allocation6 + $0x198] sm:$0xff]
    %v453 = vld [vmem:[#allocation6 + $0x1a0] sm:$0xff]
    %v454 = vld [vmem:[#allocation6 + $0x1a8] sm:$0xff]
    %v455 = vld [vmem:[#allocation6 + $0x1b0] sm:$0xff]
    %v456 = vld [vmem:[#allocation6 + $0x1b8] sm:$0xff]
    %v457 = vld [vmem:[#allocation6 + $0x1c0] sm:$0xff]
    %v458 = vld [vmem:[#allocation6 + $0x1c8] sm:$0xff]
    %v459 = vld [vmem:[#allocation6 + $0x1d0] sm:$0xff]
    %v460 = vld [vmem:[#allocation6 + $0x1d8] sm:$0xff]
    %v461 = vld [vmem:[#allocation6 + $0x1e0] sm:$0xff]
    %v462 = vld [vmem:[#allocation6 + $0x1e8] sm:$0xff]
    %v463 = vld [vmem:[#allocation6 + $0x1f0] sm:$0xff]
    %v464 = vld [vmem:[#allocation6 + $0x1f8] sm:$0xff]
    %465 = vmatprep.subr.mxu0 %v402
    %466 = vmatpush1.msra.mxu0 %v401
    %467 = vmatprep.subr.mxu0 %v406
    %468 = vmatpush1.msra.mxu0 %v405
    %469 = vmatprep.subr.mxu0 %v410
    %470 = vmatpush1.msra.mxu0 %v409
    %471 = vmatprep.subr.mxu0 %v414
    %472 = vmatpush1.msra.mxu0 %v413
    %473 = vmatprep.subr.mxu0 %v418
    %474 = vmatpush1.msra.mxu0 %v417
    %475 = vmatprep.subr.mxu0 %v422
    %476 = vmatpush1.msra.mxu0 %v421
    %477 = vmatprep.subr.mxu0 %v426
    %478 = vmatpush1.msra.mxu0 %v425
    %479 = vmatprep.subr.mxu0 %v430
    %480 = vmatpush1.msra.mxu0 %v429
    %481 = vmatprep.subr.mxu0 %v434
    %482 = vmatpush1.msra.mxu0 %v433
    %483 = vmatprep.subr.mxu0 %v438
    %484 = vmatpush1.msra.mxu0 %v437
    %485 = vmatprep.subr.mxu0 %v442
    %486 = vmatpush1.msra.mxu0 %v441
    %487 = vmatprep.subr.mxu0 %v446
    %488 = vmatpush1.msra.mxu0 %v445
    %489 = vmatprep.subr.mxu0 %v450
    %490 = vmatpush1.msra.mxu0 %v449
    %491 = vmatprep.subr.mxu0 %v454
    %492 = vmatpush1.msra.mxu0 %v453
    %493 = vmatprep.subr.mxu0 %v458
    %494 = vmatpush1.msra.mxu0 %v457
    %495 = vmatprep.subr.mxu0 %v462
    %496 = vmatpush1.msra.mxu0 %v461
    %497 = vmatprep.subr.mxu0 0.0
    %498 = vmatpush1.msra.mxu0 0.0
    %499 = vmatprep.subr.mxu0 0.0
    %500 = vmatpush1.msra.mxu0 0.0
    %501 = vmatprep.subr.mxu0 0.0
    %502 = vmatpush1.msra.mxu0 0.0
    %503 = vmatprep.subr.mxu0 0.0
    %504 = vmatpush1.msra.mxu0 0.0
    %505 = vmatprep.subr.mxu0 0.0
    %506 = vmatpush1.msra.mxu0 0.0
    %507 = vmatprep.subr.mxu0 0.0
    %508 = vmatpush1.msra.mxu0 0.0
    %509 = vmatprep.subr.mxu0 0.0
    %510 = vmatpush1.msra.mxu0 0.0
    %511 = vmatprep.subr.mxu0 0.0
    %512 = vmatpush1.msra.mxu0 0.0
    %513 = vmatprep.subr.mxu0 0.0
    %514 = vmatpush1.msra.mxu0 0.0
    %515 = vmatprep.subr.mxu0 0.0
    %516 = vmatpush1.msra.mxu0 0.0
    %517 = vmatprep.subr.mxu0 0.0
    %518 = vmatpush1.msra.mxu0 0.0
    %519 = vmatprep.subr.mxu0 0.0
    %520 = vmatpush1.msra.mxu0 0.0
    %521 = vmatprep.subr.mxu0 0.0
    %522 = vmatpush1.msra.mxu0 0.0
    %523 = vmatprep.subr.mxu0 0.0
    %524 = vmatpush1.msra.mxu0 0.0
    %525 = vmatprep.subr.mxu0 0.0
    %526 = vmatpush1.msra.mxu0 0.0
    %527 = vmatprep.subr.mxu0 0.0
    %528 = vmatpush1.msra.mxu0 0.0
    %529 = vmatprep.mubr.f32.mxu0 0.0
    %530 = vmatmul.mubr.f32.gmra.mrb[0].mxu0 0.0
    %v531 = vpop.f32.mrb[0].mxu0
    %v532 = vadd.f32 0.0, %v531
    %v533 = vpop.f32.mrb[0].mxu0
    %v534 = vadd.f32 0.0, %v533
    %535 = vdwg.mxu0
    %536 = vmatprep.subr.mxu0 %v404
    %537 = vmatpush1.msra.mxu0 %v403
    %538 = vmatprep.subr.mxu0 %v408
    %539 = vmatpush1.msra.mxu0 %v407
    %540 = vmatprep.subr.mxu0 %v412
    %541 = vmatpush1.msra.mxu0 %v411
    %542 = vmatprep.subr.mxu0 %v416
    %543 = vmatpush1.msra.mxu0 %v415
    %544 = vmatprep.subr.mxu0 %v420
    %545 = vmatpush1.msra.mxu0 %v419
    %546 = vmatprep.subr.mxu0 %v424
    %547 = vmatpush1.msra.mxu0 %v423
    %548 = vmatprep.subr.mxu0 %v428
    %549 = vmatpush1.msra.mxu0 %v427
    %550 = vmatprep.subr.mxu0 %v432
    %551 = vmatpush1.msra.mxu0 %v431
    %552 = vmatprep.subr.mxu0 %v436
    %553 = vmatpush1.msra.mxu0 %v435
    %554 = vmatprep.subr.mxu0 %v440
    %555 = vmatpush1.msra.mxu0 %v439
    %556 = vmatprep.subr.mxu0 %v444
    %557 = vmatpush1.msra.mxu0 %v443
    %558 = vmatprep.subr.mxu0 %v448
    %559 = vmatpush1.msra.mxu0 %v447
    %560 = vmatprep.subr.mxu0 %v452
    %561 = vmatpush1.msra.mxu0 %v451
    %562 = vmatprep.subr.mxu0 %v456
    %563 = vmatpush1.msra.mxu0 %v455
    %564 = vmatprep.subr.mxu0 %v460
    %565 = vmatpush1.msra.mxu0 %v459
    %566 = vmatprep.subr.mxu0 %v464
    %567 = vmatpush1.msra.mxu0 %v463
    %568 = vmatprep.subr.mxu0 0.0
    %569 = vmatpush1.msra.mxu0 0.0
    %570 = vmatprep.subr.mxu0 0.0
    %571 = vmatpush1.msra.mxu0 0.0
    %572 = vmatprep.subr.mxu0 0.0
    %573 = vmatpush1.msra.mxu0 0.0
    %574 = vmatprep.subr.mxu0 0.0
    %575 = vmatpush1.msra.mxu0 0.0
    %576 = vmatprep.subr.mxu0 0.0
    %577 = vmatpush1.msra.mxu0 0.0
    %578 = vmatprep.subr.mxu0 0.0
    %579 = vmatpush1.msra.mxu0 0.0
    %580 = vmatprep.subr.mxu0 0.0
    %581 = vmatpush1.msra.mxu0 0.0
    %582 = vmatprep.subr.mxu0 0.0
    %583 = vmatpush1.msra.mxu0 0.0
    %584 = vmatprep.subr.mxu0 0.0
    %585 = vmatpush1.msra.mxu0 0.0
    %586 = vmatprep.subr.mxu0 0.0
    %587 = vmatpush1.msra.mxu0 0.0
    %588 = vmatprep.subr.mxu0 0.0
    %589 = vmatpush1.msra.mxu0 0.0
    %590 = vmatprep.subr.mxu0 0.0
    %591 = vmatpush1.msra.mxu0 0.0
    %592 = vmatprep.subr.mxu0 0.0
    %593 = vmatpush1.msra.mxu0 0.0
    %594 = vmatprep.subr.mxu0 0.0
    %595 = vmatpush1.msra.mxu0 0.0
    %596 = vmatprep.subr.mxu0 0.0
    %597 = vmatpush1.msra.mxu0 0.0
    %598 = vmatprep.subr.mxu0 0.0
    %599 = vmatpush1.msra.mxu0 0.0
    %600 = vmatprep.mubr.f32.mxu0 0.0
    %601 = vmatmul.mubr.f32.gmra.mrb[0].mxu0 0.0
    %v602 = vpop.f32.mrb[0].mxu0
    %v603 = vadd.f32 0.0, %v602
    %v604 = vpop.f32.mrb[0].mxu0
    %v605 = vadd.f32 0.0, %v604
    %606 = vdwg.mxu0
    %v607 = vadd.f32 %v397, %v532
    %v608 = vadd.f32 %v398, %v534
    %v609 = vadd.f32 %v399, %v603
    %v610 = vadd.f32 %v400, %v605
    %v611 = vxor.u32 %v607, 2147483648
    %v612 = vxor.u32 %v608, 2147483648
    %v613 = vxor.u32 %v609, 2147483648
    %v614 = vmul.f32 %v611, 1.442695
    %v615 = vpow.pop %v614
    %v616 = vmul.f32 %v612, 1.442695
    %v617 = vpow.pop %v616
    %v618 = vmul.f32 %v613, 1.442695
    %v619 = vpow.pop %v618
    %v620 = vadd.f32 %v615, 1.0
    %v621 = vadd.f32 %v617, 1.0
    %v622 = vadd.f32 %v619, 1.0
    %v623 = vrcp.pop %v620
    %v624 = vmul.f32 1.0, %v623
    %v625 = vrcp.pop %v621
    %v626 = vmul.f32 1.0, %v625
    %v627 = vrcp.pop %v622
    %v628 = vmul.f32 1.0, %v627
    %v629 = vtanh.pop %v610
    %v630 = vmul.f32 %v626, 0.0
    %v631 = vmul.f32 %v624, %v629
    %v632 = vadd.f32 %v630, %v631
    %v633 = vtanh.pop %v632
    %v634 = vmul.f32 %v628, %v633
    %s635 = smul.u32 1, 4
    %s636 = smul.addr %s635, 8
    %s637 = scalar_lea.vmem [#allocation2], %s636
    %v638 = vld [vmem:[%s637] sm:$0xff]
    %v639 = vld [vmem:[%s637 + $0x8] sm:$0xff]
    %v640 = vld [vmem:[%s637 + $0x10] sm:$0xff]
    %v641 = vld [vmem:[%s637 + $0x18] sm:$0xff]
    %642 = vmatprep.subr.mxu0 %v402
    %643 = vmatpush1.msra.mxu0 %v401
    %644 = vmatprep.subr.mxu0 %v406
    %645 = vmatpush1.msra.mxu0 %v405
    %646 = vmatprep.subr.mxu0 %v410
    %647 = vmatpush1.msra.mxu0 %v409
    %648 = vmatprep.subr.mxu0 %v414
    %649 = vmatpush1.msra.mxu0 %v413
    %650 = vmatprep.subr.mxu0 %v418
    %651 = vmatpush1.msra.mxu0 %v417
    %652 = vmatprep.subr.mxu0 %v422
    %653 = vmatpush1.msra.mxu0 %v421
    %654 = vmatprep.subr.mxu0 %v426
    %655 = vmatpush1.msra.mxu0 %v425
    %656 = vmatprep.subr.mxu0 %v430
    %657 = vmatpush1.msra.mxu0 %v429
    %658 = vmatprep.subr.mxu0 %v434
    %659 = vmatpush1.msra.mxu0 %v433
    %660 = vmatprep.subr.mxu0 %v438
    %661 = vmatpush1.msra.mxu0 %v437
    %662 = vmatprep.subr.mxu0 %v442
    %663 = vmatpush1.msra.mxu0 %v441
    %664 = vmatprep.subr.mxu0 %v446
    %665 = vmatpush1.msra.mxu0 %v445
    %666 = vmatprep.subr.mxu0 %v450
    %667 = vmatpush1.msra.mxu0 %v449
    %668 = vmatprep.subr.mxu0 %v454
    %669 = vmatpush1.msra.mxu0 %v453
    %670 = vmatprep.subr.mxu0 %v458
    %671 = vmatpush1.msra.mxu0 %v457
    %672 = vmatprep.subr.mxu0 %v462
    %673 = vmatpush1.msra.mxu0 %v461
    %674 = vmatprep.subr.mxu0 0.0
    %675 = vmatpush1.msra.mxu0 0.0
    %676 = vmatprep.subr.mxu0 0.0
    %677 = vmatpush1.msra.mxu0 0.0
    %678 = vmatprep.subr.mxu0 0.0
    %679 = vmatpush1.msra.mxu0 0.0
    %680 = vmatprep.subr.mxu0 0.0
    %681 = vmatpush1.msra.mxu0 0.0
    %682 = vmatprep.subr.mxu0 0.0
    %683 = vmatpush1.msra.mxu0 0.0
    %684 = vmatprep.subr.mxu0 0.0
    %685 = vmatpush1.msra.mxu0 0.0
    %686 = vmatprep.subr.mxu0 0.0
    %687 = vmatpush1.msra.mxu0 0.0
    %688 = vmatprep.subr.mxu0 0.0
    %689 = vmatpush1.msra.mxu0 0.0
    %690 = vmatprep.subr.mxu0 0.0
    %691 = vmatpush1.msra.mxu0 0.0
    %692 = vmatprep.subr.mxu0 0.0
    %693 = vmatpush1.msra.mxu0 0.0
    %694 = vmatprep.subr.mxu0 0.0
    %695 = vmatpush1.msra.mxu0 0.0
    %696 = vmatprep.subr.mxu0 0.0
    %697 = vmatpush1.msra.mxu0 0.0
    %698 = vmatprep.subr.mxu0 0.0
    %699 = vmatpush1.msra.mxu0 0.0
    %700 = vmatprep.subr.mxu0 0.0
    %701 = vmatpush1.msra.mxu0 0.0
    %702 = vmatprep.subr.mxu0 0.0
    %703 = vmatpush1.msra.mxu0 0.0
    %704 = vmatprep.subr.mxu0 0.0
    %705 = vmatpush1.msra.mxu0 0.0
    %706 = vmatprep.mubr.f32.mxu0 0.0
    %707 = vmatmul.mubr.f32.gmra.mrb[0].mxu0 %v634
    %v708 = vpop.f32.mrb[0].mxu0
    %v709 = vadd.f32 0.0, %v708
    %v710 = vpop.f32.mrb[0].mxu0
    %v711 = vadd.f32 0.0, %v710
    %712 = vdwg.mxu0
    %713 = vmatprep.subr.mxu0 %v404
    %714 = vmatpush1.msra.mxu0 %v403
    %715 = vmatprep.subr.mxu0 %v408
    %716 = vmatpush1.msra.mxu0 %v407
    %717 = vmatprep.subr.mxu0 %v412
    %718 = vmatpush1.msra.mxu0 %v411
    %719 = vmatprep.subr.mxu0 %v416
    %720 = vmatpush1.msra.mxu0 %v415
    %721 = vmatprep.subr.mxu0 %v420
    %722 = vmatpush1.msra.mxu0 %v419
    %723 = vmatprep.subr.mxu0 %v424
    %724 = vmatpush1.msra.mxu0 %v423
    %725 = vmatprep.subr.mxu0 %v428
    %726 = vmatpush1.msra.mxu0 %v427
    %727 = vmatprep.subr.mxu0 %v432
    %728 = vmatpush1.msra.mxu0 %v431
    %729 = vmatprep.subr.mxu0 %v436
    %730 = vmatpush1.msra.mxu0 %v435
    %731 = vmatprep.subr.mxu0 %v440
    %732 = vmatpush1.msra.mxu0 %v439
    %733 = vmatprep.subr.mxu0 %v444
    %734 = vmatpush1.msra.mxu0 %v443
    %735 = vmatprep.subr.mxu0 %v448
    %736 = vmatpush1.msra.mxu0 %v447
    %737 = vmatprep.subr.mxu0 %v452
    %738 = vmatpush1.msra.mxu0 %v451
    %739 = vmatprep.subr.mxu0 %v456
    %740 = vmatpush1.msra.mxu0 %v455
    %741 = vmatprep.subr.mxu0 %v460
    %742 = vmatpush1.msra.mxu0 %v459
    %743 = vmatprep.subr.mxu0 %v464
    %744 = vmatpush1.msra.mxu0 %v463
    %745 = vmatprep.subr.mxu0 0.0
    %746 = vmatpush1.msra.mxu0 0.0
    %747 = vmatprep.subr.mxu0 0.0
    %748 = vmatpush1.msra.mxu0 0.0
    %749 = vmatprep.subr.mxu0 0.0
    %750 = vmatpush1.msra.mxu0 0.0
    %751 = vmatprep.subr.mxu0 0.0
    %752 = vmatpush1.msra.mxu0 0.0
    %753 = vmatprep.subr.mxu0 0.0
    %754 = vmatpush1.msra.mxu0 0.0
    %755 = vmatprep.subr.mxu0 0.0
    %756 = vmatpush1.msra.mxu0 0.0
    %757 = vmatprep.subr.mxu0 0.0
    %758 = vmatpush1.msra.mxu0 0.0
    %759 = vmatprep.subr.mxu0 0.0
    %760 = vmatpush1.msra.mxu0 0.0
    %761 = vmatprep.subr.mxu0 0.0
    %762 = vmatpush1.msra.mxu0 0.0
    %763 = vmatprep.subr.mxu0 0.0
    %764 = vmatpush1.msra.mxu0 0.0
    %765 = vmatprep.subr.mxu0 0.0
    %766 = vmatpush1.msra.mxu0 0.0
    %767 = vmatprep.subr.mxu0 0.0
    %768 = vmatpush1.msra.mxu0 0.0
    %769 = vmatprep.subr.mxu0 0.0
    %770 = vmatpush1.msra.mxu0 0.0
    %771 = vmatprep.subr.mxu0 0.0
    %772 = vmatpush1.msra.mxu0 0.0
    %773 = vmatprep.subr.mxu0 0.0
    %774 = vmatpush1.msra.mxu0 0.0
    %775 = vmatprep.subr.mxu0 0.0
    %776 = vmatpush1.msra.mxu0 0.0
    %777 = vmatprep.mubr.f32.mxu0 0.0
    %778 = vmatmul.mubr.f32.gmra.mrb[0].mxu0 %v634
    %v779 = vpop.f32.mrb[0].mxu0
    %v780 = vadd.f32 0.0, %v779
    %v781 = vpop.f32.mrb[0].mxu0
    %v782 = vadd.f32 0.0, %v781
    %783 = vdwg.mxu0
    %v784 = vadd.f32 %v638, %v709
    %v785 = vadd.f32 %v639, %v711
    %v786 = vadd.f32 %v640, %v780
    %v787 = vadd.f32 %v641, %v782
    %v788 = vxor.u32 %v784, 2147483648
    %v789 = vxor.u32 %v785, 2147483648
    %v790 = vxor.u32 %v786, 2147483648
    %v791 = vmul.f32 %v788, 1.442695
    %v792 = vpow.pop %v791
    %v793 = vmul.f32 %v789, 1.442695
    %v794 = vpow.pop %v793
    %v795 = vmul.f32 %v790, 1.442695
    %v796 = vpow.pop %v795
    %v797 = vadd.f32 %v792, 1.0
    %v798 = vadd.f32 %v794, 1.0
    %v799 = vadd.f32 %v796, 1.0
    %v800 = vrcp.pop %v797
    %v801 = vmul.f32 1.0, %v800
    %v802 = vrcp.pop %v798
    %v803 = vmul.f32 1.0, %v802
    %v804 = vrcp.pop %v799
    %v805 = vmul.f32 1.0, %v804
    %v806 = vtanh.pop %v787
    %v807 = vmul.f32 %v803, %v632
    %v808 = vmul.f32 %v801, %v806
    %v809 = vadd.f32 %v807, %v808
    %v810 = vtanh.pop %v809
    %v811 = vmul.f32 %v805, %v810
    %s812 = smul.u32 2, 4
    %s813 = smul.addr %s812, 8
    %s814 = scalar_lea.vmem [#allocation2], %s813
    %v815 = vld [vmem:[%s814] sm:$0xff]
    %v816 = vld [vmem:[%s814 + $0x8] sm:$0xff]
    %v817 = vld [vmem:[%s814 + $0x10] sm:$0xff]
    %v818 = vld [vmem:[%s814 + $0x18] sm:$0xff]
    %819 = vmatprep.subr.mxu0 %v402
    %820 = vmatpush1.msra.mxu0 %v401
    %821 = vmatprep.subr.mxu0 %v406
    %822 = vmatpush1.msra.mxu0 %v405
    %823 = vmatprep.subr.mxu0 %v410
    %824 = vmatpush1.msra.mxu0 %v409
    %825 = vmatprep.subr.mxu0 %v414
    %826 = vmatpush1.msra.mxu0 %v413
    %827 = vmatprep.subr.mxu0 %v418
    %828 = vmatpush1.msra.mxu0 %v417
    %829 = vmatprep.subr.mxu0 %v422
    %830 = vmatpush1.msra.mxu0 %v421
    %831 = vmatprep.subr.mxu0 %v426
    %832 = vmatpush1.msra.mxu0 %v425
    %833 = vmatprep.subr.mxu0 %v430
    %834 = vmatpush1.msra.mxu0 %v429
    %835 = vmatprep.subr.mxu0 %v434
    %836 = vmatpush1.msra.mxu0 %v433
    %837 = vmatprep.subr.mxu0 %v438
    %838 = vmatpush1.msra.mxu0 %v437
    %839 = vmatprep.subr.mxu0 %v442
    %840 = vmatpush1.msra.mxu0 %v441
    %841 = vmatprep.subr.mxu0 %v446
    %842 = vmatpush1.msra.mxu0 %v445
    %843 = vmatprep.subr.mxu0 %v450
    %844 = vmatpush1.msra.mxu0 %v449
    %845 = vmatprep.subr.mxu0 %v454
    %846 = vmatpush1.msra.mxu0 %v453
    %847 = vmatprep.subr.mxu0 %v458
    %848 = vmatpush1.msra.mxu0 %v457
    %849 = vmatprep.subr.mxu0 %v462
    %850 = vmatpush1.msra.mxu0 %v461
    %851 = vmatprep.subr.mxu0 0.0
    %852 = vmatpush1.msra.mxu0 0.0
    %853 = vmatprep.subr.mxu0 0.0
    %854 = vmatpush1.msra.mxu0 0.0
    %855 = vmatprep.subr.mxu0 0.0
    %856 = vmatpush1.msra.mxu0 0.0
    %857 = vmatprep.subr.mxu0 0.0
    %858 = vmatpush1.msra.mxu0 0.0
    %859 = vmatprep.subr.mxu0 0.0
    %860 = vmatpush1.msra.mxu0 0.0
    %861 = vmatprep.subr.mxu0 0.0
    %862 = vmatpush1.msra.mxu0 0.0
    %863 = vmatprep.subr.mxu0 0.0
    %864 = vmatpush1.msra.mxu0 0.0
    %865 = vmatprep.subr.mxu0 0.0
    %866 = vmatpush1.msra.mxu0 0.0
    %867 = vmatprep.subr.mxu0 0.0
    %868 = vmatpush1.msra.mxu0 0.0
    %869 = vmatprep.subr.mxu0 0.0
    %870 = vmatpush1.msra.mxu0 0.0
    %871 = vmatprep.subr.mxu0 0.0
    %872 = vmatpush1.msra.mxu0 0.0
    %873 = vmatprep.subr.mxu0 0.0
    %874 = vmatpush1.msra.mxu0 0.0
    %875 = vmatprep.subr.mxu0 0.0
    %876 = vmatpush1.msra.mxu0 0.0
    %877 = vmatprep.subr.mxu0 0.0
    %878 = vmatpush1.msra.mxu0 0.0
    %879 = vmatprep.subr.mxu0 0.0
    %880 = vmatpush1.msra.mxu0 0.0
    %881 = vmatprep.subr.mxu0 0.0
    %882 = vmatpush1.msra.mxu0 0.0
    %883 = vmatprep.mubr.f32.mxu0 0.0
    %884 = vmatmul.mubr.f32.gmra.mrb[0].mxu0 %v811
    %v885 = vpop.f32.mrb[0].mxu0
    %v886 = vadd.f32 0.0, %v885
    %v887 = vpop.f32.mrb[0].mxu0
    %v888 = vadd.f32 0.0, %v887
    %889 = vdwg.mxu0
    %890 = vmatprep.subr.mxu0 %v404
    %891 = vmatpush1.msra.mxu0 %v403
    %892 = vmatprep.subr.mxu0 %v408
    %893 = vmatpush1.msra.mxu0 %v407
    %894 = vmatprep.subr.mxu0 %v412
    %895 = vmatpush1.msra.mxu0 %v411
    %896 = vmatprep.subr.mxu0 %v416
    %897 = vmatpush1.msra.mxu0 %v415
    %898 = vmatprep.subr.mxu0 %v420
    %899 = vmatpush1.msra.mxu0 %v419
    %900 = vmatprep.subr.mxu0 %v424
    %901 = vmatpush1.msra.mxu0 %v423
    %902 = vmatprep.subr.mxu0 %v428
    %903 = vmatpush1.msra.mxu0 %v427
    %904 = vmatprep.subr.mxu0 %v432
    %905 = vmatpush1.msra.mxu0 %v431
    %906 = vmatprep.subr.mxu0 %v436
    %907 = vmatpush1.msra.mxu0 %v435
    %908 = vmatprep.subr.mxu0 %v440
    %909 = vmatpush1.msra.mxu0 %v439
    %910 = vmatprep.subr.mxu0 %v444
    %911 = vmatpush1.msra.mxu0 %v443
    %912 = vmatprep.subr.mxu0 %v448
    %913 = vmatpush1.msra.mxu0 %v447
    %914 = vmatprep.subr.mxu0 %v452
    %915 = vmatpush1.msra.mxu0 %v451
    %916 = vmatprep.subr.mxu0 %v456
    %917 = vmatpush1.msra.mxu0 %v455
    %918 = vmatprep.subr.mxu0 %v460
    %919 = vmatpush1.msra.mxu0 %v459
    %920 = vmatprep.subr.mxu0 %v464
    %921 = vmatpush1.msra.mxu0 %v463
    %922 = vmatprep.subr.mxu0 0.0
    %923 = vmatpush1.msra.mxu0 0.0
    %924 = vmatprep.subr.mxu0 0.0
    %925 = vmatpush1.msra.mxu0 0.0
    %926 = vmatprep.subr.mxu0 0.0
    %927 = vmatpush1.msra.mxu0 0.0
    %928 = vmatprep.subr.mxu0 0.0
    %929 = vmatpush1.msra.mxu0 0.0
    %930 = vmatprep.subr.mxu0 0.0
    %931 = vmatpush1.msra.mxu0 0.0
    %932 = vmatprep.subr.mxu0 0.0
    %933 = vmatpush1.msra.mxu0 0.0
    %934 = vmatprep.subr.mxu0 0.0
    %935 = vmatpush1.msra.mxu0 0.0
    %936 = vmatprep.subr.mxu0 0.0
    %937 = vmatpush1.msra.mxu0 0.0
    %938 = vmatprep.subr.mxu0 0.0
    %939 = vmatpush1.msra.mxu0 0.0
    %940 = vmatprep.subr.mxu0 0.0
    %941 = vmatpush1.msra.mxu0 0.0
    %942 = vmatprep.subr.mxu0 0.0
    %943 = vmatpush1.msra.mxu0 0.0
    %944 = vmatprep.subr.mxu0 0.0
    %945 = vmatpush1.msra.mxu0 0.0
    %946 = vmatprep.subr.mxu0 0.0
    %947 = vmatpush1.msra.mxu0 0.0
    %948 = vmatprep.subr.mxu0 0.0
    %949 = vmatpush1.msra.mxu0 0.0
    %950 = vmatprep.subr.mxu0 0.0
    %951 = vmatpush1.msra.mxu0 0.0
    %952 = vmatprep.subr.mxu0 0.0
    %953 = vmatpush1.msra.mxu0 0.0
    %954 = vmatprep.mubr.f32.mxu0 0.0
    %955 = vmatmul.mubr.f32.gmra.mrb[0].mxu0 %v811
    %v956 = vpop.f32.mrb[0].mxu0
    %v957 = vadd.f32 0.0, %v956
    %v958 = vpop.f32.mrb[0].mxu0
    %v959 = vadd.f32 0.0, %v958
    %960 = vdwg.mxu0
    %v961 = vadd.f32 %v815, %v886
    %v962 = vadd.f32 %v816, %v888
    %v963 = vadd.f32 %v817, %v957
    %v964 = vadd.f32 %v818, %v959
    %v965 = vxor.u32 %v961, 2147483648
    %v966 = vxor.u32 %v962, 2147483648
    %v967 = vxor.u32 %v963, 2147483648
    %v968 = vmul.f32 %v965, 1.442695
    %v969 = vpow.pop %v968
    %v970 = vmul.f32 %v966, 1.442695
    %v971 = vpow.pop %v970
    %v972 = vmul.f32 %v967, 1.442695
    %v973 = vpow.pop %v972
    %v974 = vadd.f32 %v969, 1.0
    %v975 = vadd.f32 %v971, 1.0
    %v976 = vadd.f32 %v973, 1.0
    %v977 = vrcp.pop %v974
    %v978 = vmul.f32 1.0, %v977
    %v979 = vrcp.pop %v975
    %v980 = vmul.f32 1.0, %v979
    %v981 = vrcp.pop %v976
    %v982 = vmul.f32 1.0, %v981
    %v983 = vtanh.pop %v964
    %v984 = vmul.f32 %v980, %v809
    %v985 = vmul.f32 %v978, %v983
    %v986 = vadd.f32 %v984, %v985
    %v987 = vtanh.pop %v986
    %v988 = vmul.f32 %v982, %v987
    %s989 = smul.u32 3, 4
    %s990 = smul.addr %s989, 8
    %s991 = scalar_lea.vmem [#allocation2], %s990
    %v992 = vld [vmem:[%s991] sm:$0xff]
    %v993 = vld [vmem:[%s991 + $0x8] sm:$0xff]
    %v994 = vld [vmem:[%s991 + $0x10] sm:$0xff]
    %v995 = vld [vmem:[%s991 + $0x18] sm:$0xff]
    %996 = vmatprep.subr.mxu0 %v402
    %997 = vmatpush1.msra.mxu0 %v401
    %998 = vmatprep.subr.mxu0 %v406
    %999 = vmatpush1.msra.mxu0 %v405
    %1000 = vmatprep.subr.mxu0 %v410
    %1001 = vmatpush1.msra.mxu0 %v409
    %1002 = vmatprep.subr.mxu0 %v414
    %1003 = vmatpush1.msra.mxu0 %v413
    %1004 = vmatprep.subr.mxu0 %v418
    %1005 = vmatpush1.msra.mxu0 %v417
    %1006 = vmatprep.subr.mxu0 %v422
    %1007 = vmatpush1.msra.mxu0 %v421
    %1008 = vmatprep.subr.mxu0 %v426
    %1009 = vmatpush1.msra.mxu0 %v425
    %1010 = vmatprep.subr.mxu0 %v430
    %1011 = vmatpush1.msra.mxu0 %v429
    %1012 = vmatprep.subr.mxu0 %v434
    %1013 = vmatpush1.msra.mxu0 %v433
    %1014 = vmatprep.subr.mxu0 %v438
    %1015 = vmatpush1.msra.mxu0 %v437
    %1016 = vmatprep.subr.mxu0 %v442
    %1017 = vmatpush1.msra.mxu0 %v441
    %1018 = vmatprep.subr.mxu0 %v446
    %1019 = vmatpush1.msra.mxu0 %v445
    %1020 = vmatprep.subr.mxu0 %v450
    %1021 = vmatpush1.msra.mxu0 %v449
    %1022 = vmatprep.subr.mxu0 %v454
    %1023 = vmatpush1.msra.mxu0 %v453
    %1024 = vmatprep.subr.mxu0 %v458
    %1025 = vmatpush1.msra.mxu0 %v457
    %1026 = vmatprep.subr.mxu0 %v462
    %1027 = vmatpush1.msra.mxu0 %v461
    %1028 = vmatprep.subr.mxu0 0.0
    %1029 = vmatpush1.msra.mxu0 0.0
    %1030 = vmatprep.subr.mxu0 0.0
    %1031 = vmatpush1.msra.mxu0 0.0
    %1032 = vmatprep.subr.mxu0 0.0
    %1033 = vmatpush1.msra.mxu0 0.0
    %1034 = vmatprep.subr.mxu0 0.0
    %1035 = vmatpush1.msra.mxu0 0.0
    %1036 = vmatprep.subr.mxu0 0.0
    %1037 = vmatpush1.msra.mxu0 0.0
    %1038 = vmatprep.subr.mxu0 0.0
    %1039 = vmatpush1.msra.mxu0 0.0
    %1040 = vmatprep.subr.mxu0 0.0
    %1041 = vmatpush1.msra.mxu0 0.0
    %1042 = vmatprep.subr.mxu0 0.0
    %1043 = vmatpush1.msra.mxu0 0.0
    %1044 = vmatprep.subr.mxu0 0.0
    %1045 = vmatpush1.msra.mxu0 0.0
    %1046 = vmatprep.subr.mxu0 0.0
    %1047 = vmatpush1.msra.mxu0 0.0
    %1048 = vmatprep.subr.mxu0 0.0
    %1049 = vmatpush1.msra.mxu0 0.0
    %1050 = vmatprep.subr.mxu0 0.0
    %1051 = vmatpush1.msra.mxu0 0.0
    %1052 = vmatprep.subr.mxu0 0.0
    %1053 = vmatpush1.msra.mxu0 0.0
    %1054 = vmatprep.subr.mxu0 0.0
    %1055 = vmatpush1.msra.mxu0 0.0
    %1056 = vmatprep.subr.mxu0 0.0
    %1057 = vmatpush1.msra.mxu0 0.0
    %1058 = vmatprep.subr.mxu0 0.0
    %1059 = vmatpush1.msra.mxu0 0.0
    %1060 = vmatprep.mubr.f32.mxu0 0.0
    %1061 = vmatmul.mubr.f32.gmra.mrb[0].mxu0 %v988
    %v1062 = vpop.f32.mrb[0].mxu0
    %v1063 = vadd.f32 0.0, %v1062
    %v1064 = vpop.f32.mrb[0].mxu0
    %v1065 = vadd.f32 0.0, %v1064
    %1066 = vdwg.mxu0
    %1067 = vmatprep.subr.mxu0 %v404
    %1068 = vmatpush1.msra.mxu0 %v403
    %1069 = vmatprep.subr.mxu0 %v408
    %1070 = vmatpush1.msra.mxu0 %v407
    %1071 = vmatprep.subr.mxu0 %v412
    %1072 = vmatpush1.msra.mxu0 %v411
    %1073 = vmatprep.subr.mxu0 %v416
    %1074 = vmatpush1.msra.mxu0 %v415
    %1075 = vmatprep.subr.mxu0 %v420
    %1076 = vmatpush1.msra.mxu0 %v419
    %1077 = vmatprep.subr.mxu0 %v424
    %1078 = vmatpush1.msra.mxu0 %v423
    %1079 = vmatprep.subr.mxu0 %v428
    %1080 = vmatpush1.msra.mxu0 %v427
    %1081 = vmatprep.subr.mxu0 %v432
    %1082 = vmatpush1.msra.mxu0 %v431
    %1083 = vmatprep.subr.mxu0 %v436
    %1084 = vmatpush1.msra.mxu0 %v435
    %1085 = vmatprep.subr.mxu0 %v440
    %1086 = vmatpush1.msra.mxu0 %v439
    %1087 = vmatprep.subr.mxu0 %v444
    %1088 = vmatpush1.msra.mxu0 %v443
    %1089 = vmatprep.subr.mxu0 %v448
    %1090 = vmatpush1.msra.mxu0 %v447
    %1091 = vmatprep.subr.mxu0 %v452
    %1092 = vmatpush1.msra.mxu0 %v451
    %1093 = vmatprep.subr.mxu0 %v456
    %1094 = vmatpush1.msra.mxu0 %v455
    %1095 = vmatprep.subr.mxu0 %v460
    %1096 = vmatpush1.msra.mxu0 %v459
    %1097 = vmatprep.subr.mxu0 %v464
    %1098 = vmatpush1.msra.mxu0 %v463
    %1099 = vmatprep.subr.mxu0 0.0
    %1100 = vmatpush1.msra.mxu0 0.0
    %1101 = vmatprep.subr.mxu0 0.0
    %1102 = vmatpush1.msra.mxu0 0.0
    %1103 = vmatprep.subr.mxu0 0.0
    %1104 = vmatpush1.msra.mxu0 0.0
    %1105 = vmatprep.subr.mxu0 0.0
    %1106 = vmatpush1.msra.mxu0 0.0
    %1107 = vmatprep.subr.mxu0 0.0
    %1108 = vmatpush1.msra.mxu0 0.0
    %1109 = vmatprep.subr.mxu0 0.0
    %1110 = vmatpush1.msra.mxu0 0.0
    %1111 = vmatprep.subr.mxu0 0.0
    %1112 = vmatpush1.msra.mxu0 0.0
    %1113 = vmatprep.subr.mxu0 0.0
    %1114 = vmatpush1.msra.mxu0 0.0
    %1115 = vmatprep.subr.mxu0 0.0
    %1116 = vmatpush1.msra.mxu0 0.0
    %1117 = vmatprep.subr.mxu0 0.0
    %1118 = vmatpush1.msra.mxu0 0.0
    %1119 = vmatprep.subr.mxu0 0.0
    %1120 = vmatpush1.msra.mxu0 0.0
    %1121 = vmatprep.subr.mxu0 0.0
    %1122 = vmatpush1.msra.mxu0 0.0
    %1123 = vmatprep.subr.mxu0 0.0
    %1124 = vmatpush1.msra.mxu0 0.0
    %1125 = vmatprep.subr.mxu0 0.0
    %1126 = vmatpush1.msra.mxu0 0.0
    %1127 = vmatprep.subr.mxu0 0.0
    %1128 = vmatpush1.msra.mxu0 0.0
    %1129 = vmatprep.subr.mxu0 0.0
    %1130 = vmatpush1.msra.mxu0 0.0
    %1131 = vmatprep.mubr.f32.mxu0 0.0
    %1132 = vmatmul.mubr.f32.gmra.mrb[0].mxu0 %v988
    %v1133 = vpop.f32.mrb[0].mxu0
    %v1134 = vadd.f32 0.0, %v1133
    %v1135 = vpop.f32.mrb[0].mxu0
    %v1136 = vadd.f32 0.0, %v1135
    %1137 = vdwg.mxu0
    %v1138 = vadd.f32 %v992, %v1063
    %v1139 = vadd.f32 %v993, %v1065
    %v1140 = vadd.f32 %v994, %v1134
    %v1141 = vadd.f32 %v995, %v1136
    %v1142 = vxor.u32 %v1138, 2147483648
    %v1143 = vxor.u32 %v1139, 2147483648
    %v1144 = vxor.u32 %v1140, 2147483648
    %v1145 = vmul.f32 %v1142, 1.442695
    %v1146 = vpow.pop %v1145
    %v1147 = vmul.f32 %v1143, 1.442695
    %v1148 = vpow.pop %v1147
    %v1149 = vmul.f32 %v1144, 1.442695
    %v1150 = vpow.pop %v1149
    %v1151 = vadd.f32 %v1146, 1.0
    %v1152 = vadd.f32 %v1148, 1.0
    %v1153 = vadd.f32 %v1150, 1.0
    %v1154 = vrcp.pop %v1151
    %v1155 = vmul.f32 1.0, %v1154
    %v1156 = vrcp.pop %v1152
    %v1157 = vmul.f32 1.0, %v1156
    %v1158 = vrcp.pop %v1153
    %v1159 = vmul.f32 1.0, %v1158
    %v1160 = vtanh.pop %v1141
    %v1161 = vmul.f32 %v1157, %v986
    %v1162 = vmul.f32 %v1155, %v1160
    %v1163 = vadd.f32 %v1161, %v1162
    %v1164 = vtanh.pop %v1163
    %v1165 = vmul.f32 %v1159, %v1164
    %s1166 = smul.u32 4, 4
    %s1167 = smul.addr %s1166, 8
    %s1168 = scalar_lea.vmem [#allocation2], %s1167
    %v1169 = vld [vmem:[%s1168] sm:$0xff]
    %v1170 = vld [vmem:[%s1168 + $0x8] sm:$0xff]
    %v1171 = vld [vmem:[%s1168 + $0x10] sm:$0xff]
    %v1172 = vld [vmem:[%s1168 + $0x18] sm:$0xff]
    %1173 = vmatprep.subr.mxu0 %v402
    %1174 = vmatpush1.msra.mxu0 %v401
    %1175 = vmatprep.subr.mxu0 %v406
    %1176 = vmatpush1.msra.mxu0 %v405
    %1177 = vmatprep.subr.mxu0 %v410
    %1178 = vmatpush1.msra.mxu0 %v409
    %1179 = vmatprep.subr.mxu0 %v414
    %1180 = vmatpush1.msra.mxu0 %v413
    %1181 = vmatprep.subr.mxu0 %v418
    %1182 = vmatpush1.msra.mxu0 %v417
    %1183 = vmatprep.subr.mxu0 %v422
    %1184 = vmatpush1.msra.mxu0 %v421
    %1185 = vmatprep.subr.mxu0 %v426
    %1186 = vmatpush1.msra.mxu0 %v425
    %1187 = vmatprep.subr.mxu0 %v430
    %1188 = vmatpush1.msra.mxu0 %v429
    %1189 = vmatprep.subr.mxu0 %v434
    %1190 = vmatpush1.msra.mxu0 %v433
    %1191 = vmatprep.subr.mxu0 %v438
    %1192 = vmatpush1.msra.mxu0 %v437
    %1193 = vmatprep.subr.mxu0 %v442
    %1194 = vmatpush1.msra.mxu0 %v441
    %1195 = vmatprep.subr.mxu0 %v446
    %1196 = vmatpush1.msra.mxu0 %v445
    %1197 = vmatprep.subr.mxu0 %v450
    %1198 = vmatpush1.msra.mxu0 %v449
    %1199 = vmatprep.subr.mxu0 %v454
    %1200 = vmatpush1.msra.mxu0 %v453
    %1201 = vmatprep.subr.mxu0 %v458
    %1202 = vmatpush1.msra.mxu0 %v457
    %1203 = vmatprep.subr.mxu0 %v462
    %1204 = vmatpush1.msra.mxu0 %v461
    %1205 = vmatprep.subr.mxu0 0.0
    %1206 = vmatpush1.msra.mxu0 0.0
    %1207 = vmatprep.subr.mxu0 0.0
    %1208 = vmatpush1.msra.mxu0 0.0
    %1209 = vmatprep.subr.mxu0 0.0
    %1210 = vmatpush1.msra.mxu0 0.0
    %1211 = vmatprep.subr.mxu0 0.0
    %1212 = vmatpush1.msra.mxu0 0.0
    %1213 = vmatprep.subr.mxu0 0.0
    %1214 = vmatpush1.msra.mxu0 0.0
    %1215 = vmatprep.subr.mxu0 0.0
    %1216 = vmatpush1.msra.mxu0 0.0
    %1217 = vmatprep.subr.mxu0 0.0
    %1218 = vmatpush1.msra.mxu0 0.0
    %1219 = vmatprep.subr.mxu0 0.0
    %1220 = vmatpush1.msra.mxu0 0.0
    %1221 = vmatprep.subr.mxu0 0.0
    %1222 = vmatpush1.msra.mxu0 0.0
    %1223 = vmatprep.subr.mxu0 0.0
    %1224 = vmatpush1.msra.mxu0 0.0
    %1225 = vmatprep.subr.mxu0 0.0
    %1226 = vmatpush1.msra.mxu0 0.0
    %1227 = vmatprep.subr.mxu0 0.0
    %1228 = vmatpush1.msra.mxu0 0.0
    %1229 = vmatprep.subr.mxu0 0.0
    %1230 = vmatpush1.msra.mxu0 0.0
    %1231 = vmatprep.subr.mxu0 0.0
    %1232 = vmatpush1.msra.mxu0 0.0
    %1233 = vmatprep.subr.mxu0 0.0
    %1234 = vmatpush1.msra.mxu0 0.0
    %1235 = vmatprep.subr.mxu0 0.0
    %1236 = vmatpush1.msra.mxu0 0.0
    %1237 = vmatprep.mubr.f32.mxu0 0.0
    %1238 = vmatmul.mubr.f32.gmra.mrb[0].mxu0 %v1165
    %v1239 = vpop.f32.mrb[0].mxu0
    %v1240 = vadd.f32 0.0, %v1239
    %v1241 = vpop.f32.mrb[0].mxu0
    %v1242 = vadd.f32 0.0, %v1241
    %1243 = vdwg.mxu0
    %1244 = vmatprep.subr.mxu0 %v404
    %1245 = vmatpush1.msra.mxu0 %v403
    %1246 = vmatprep.subr.mxu0 %v408
    %1247 = vmatpush1.msra.mxu0 %v407
    %1248 = vmatprep.subr.mxu0 %v412
    %1249 = vmatpush1.msra.mxu0 %v411
    %1250 = vmatprep.subr.mxu0 %v416
    %1251 = vmatpush1.msra.mxu0 %v415
    %1252 = vmatprep.subr.mxu0 %v420
    %1253 = vmatpush1.msra.mxu0 %v419
    %1254 = vmatprep.subr.mxu0 %v424
    %1255 = vmatpush1.msra.mxu0 %v423
    %1256 = vmatprep.subr.mxu0 %v428
    %1257 = vmatpush1.msra.mxu0 %v427
    %1258 = vmatprep.subr.mxu0 %v432
    %1259 = vmatpush1.msra.mxu0 %v431
    %1260 = vmatprep.subr.mxu0 %v436
    %1261 = vmatpush1.msra.mxu0 %v435
    %1262 = vmatprep.subr.mxu0 %v440
    %1263 = vmatpush1.msra.mxu0 %v439
    %1264 = vmatprep.subr.mxu0 %v444
    %1265 = vmatpush1.msra.mxu0 %v443
    %1266 = vmatprep.subr.mxu0 %v448
    %1267 = vmatpush1.msra.mxu0 %v447
    %1268 = vmatprep.subr.mxu0 %v452
    %1269 = vmatpush1.msra.mxu0 %v451
    %1270 = vmatprep.subr.mxu0 %v456
    %1271 = vmatpush1.msra.mxu0 %v455
    %1272 = vmatprep.subr.mxu0 %v460
    %1273 = vmatpush1.msra.mxu0 %v459
    %1274 = vmatprep.subr.mxu0 %v464
    %1275 = vmatpush1.msra.mxu0 %v463
    %1276 = vmatprep.subr.mxu0 0.0
    %1277 = vmatpush1.msra.mxu0 0.0
    %1278 = vmatprep.subr.mxu0 0.0
    %1279 = vmatpush1.msra.mxu0 0.0
    %1280 = vmatprep.subr.mxu0 0.0
    %1281 = vmatpush1.msra.mxu0 0.0
    %1282 = vmatprep.subr.mxu0 0.0
    %1283 = vmatpush1.msra.mxu0 0.0
    %1284 = vmatprep.subr.mxu0 0.0
    %1285 = vmatpush1.msra.mxu0 0.0
    %1286 = vmatprep.subr.mxu0 0.0
    %1287 = vmatpush1.msra.mxu0 0.0
    %1288 = vmatprep.subr.mxu0 0.0
    %1289 = vmatpush1.msra.mxu0 0.0
    %1290 = vmatprep.subr.mxu0 0.0
    %1291 = vmatpush1.msra.mxu0 0.0
    %1292 = vmatprep.subr.mxu0 0.0
    %1293 = vmatpush1.msra.mxu0 0.0
    %1294 = vmatprep.subr.mxu0 0.0
    %1295 = vmatpush1.msra.mxu0 0.0
    %1296 = vmatprep.subr.mxu0 0.0
    %1297 = vmatpush1.msra.mxu0 0.0
    %1298 = vmatprep.subr.mxu0 0.0
    %1299 = vmatpush1.msra.mxu0 0.0
    %1300 = vmatprep.subr.mxu0 0.0
    %1301 = vmatpush1.msra.mxu0 0.0
    %1302 = vmatprep.subr.mxu0 0.0
    %1303 = vmatpush1.msra.mxu0 0.0
    %1304 = vmatprep.subr.mxu0 0.0
    %1305 = vmatpush1.msra.mxu0 0.0
    %1306 = vmatprep.subr.mxu0 0.0
    %1307 = vmatpush1.msra.mxu0 0.0
    %1308 = vmatprep.mubr.f32.mxu0 0.0
    %1309 = vmatmul.mubr.f32.gmra.mrb[0].mxu0 %v1165
    %v1310 = vpop.f32.mrb[0].mxu0
    %v1311 = vadd.f32 0.0, %v1310
    %v1312 = vpop.f32.mrb[0].mxu0
    %v1313 = vadd.f32 0.0, %v1312
    %1314 = vdwg.mxu0
    %v1315 = vadd.f32 %v1169, %v1240
    %v1316 = vadd.f32 %v1170, %v1242
    %v1317 = vadd.f32 %v1171, %v1311
    %v1318 = vadd.f32 %v1172, %v1313
    %v1319 = vxor.u32 %v1315, 2147483648
    %v1320 = vxor.u32 %v1316, 2147483648
    %v1321 = vxor.u32 %v1317, 2147483648
    %v1322 = vmul.f32 %v1319, 1.442695
    %v1323 = vpow.pop %v1322
    %v1324 = vmul.f32 %v1320, 1.442695
    %v1325 = vpow.pop %v1324
    %v1326 = vmul.f32 %v1321, 1.442695
    %v1327 = vpow.pop %v1326
    %v1328 = vadd.f32 %v1323, 1.0
    %v1329 = vadd.f32 %v1325, 1.0
    %v1330 = vadd.f32 %v1327, 1.0
    %v1331 = vrcp.pop %v1328
    %v1332 = vmul.f32 1.0, %v1331
    %v1333 = vrcp.pop %v1329
    %v1334 = vmul.f32 1.0, %v1333
    %v1335 = vrcp.pop %v1330
    %v1336 = vmul.f32 1.0, %v1335
    %v1337 = vtanh.pop %v1318
    %v1338 = vmul.f32 %v1334, %v1163
    %v1339 = vmul.f32 %v1332, %v1337
    %v1340 = vadd.f32 %v1338, %v1339
    %v1341 = vtanh.pop %v1340
    %v1342 = vmul.f32 %v1336, %v1341
    %s1343 = smul.u32 5, 4
    %s1344 = smul.addr %s1343, 8
    %s1345 = scalar_lea.vmem [#allocation2], %s1344
    %v1346 = vld [vmem:[%s1345] sm:$0xff]
    %v1347 = vld [vmem:[%s1345 + $0x8] sm:$0xff]
    %v1348 = vld [vmem:[%s1345 + $0x10] sm:$0xff]
    %v1349 = vld [vmem:[%s1345 + $0x18] sm:$0xff]
    %1350 = vmatprep.subr.mxu0 %v402
    %1351 = vmatpush1.msra.mxu0 %v401
    %1352 = vmatprep.subr.mxu0 %v406
    %1353 = vmatpush1.msra.mxu0 %v405
    %1354 = vmatprep.subr.mxu0 %v410
    %1355 = vmatpush1.msra.mxu0 %v409
    %1356 = vmatprep.subr.mxu0 %v414
    %1357 = vmatpush1.msra.mxu0 %v413
    %1358 = vmatprep.subr.mxu0 %v418
    %1359 = vmatpush1.msra.mxu0 %v417
    %1360 = vmatprep.subr.mxu0 %v422
    %1361 = vmatpush1.msra.mxu0 %v421
    %1362 = vmatprep.subr.mxu0 %v426
    %1363 = vmatpush1.msra.mxu0 %v425
    %1364 = vmatprep.subr.mxu0 %v430
    %1365 = vmatpush1.msra.mxu0 %v429
    %1366 = vmatprep.subr.mxu0 %v434
    %1367 = vmatpush1.msra.mxu0 %v433
    %1368 = vmatprep.subr.mxu0 %v438
    %1369 = vmatpush1.msra.mxu0 %v437
    %1370 = vmatprep.subr.mxu0 %v442
    %1371 = vmatpush1.msra.mxu0 %v441
    %1372 = vmatprep.subr.mxu0 %v446
    %1373 = vmatpush1.msra.mxu0 %v445
    %1374 = vmatprep.subr.mxu0 %v450
    %1375 = vmatpush1.msra.mxu0 %v449
    %1376 = vmatprep.subr.mxu0 %v454
    %1377 = vmatpush1.msra.mxu0 %v453
    %1378 = vmatprep.subr.mxu0 %v458
    %1379 = vmatpush1.msra.mxu0 %v457
    %1380 = vmatprep.subr.mxu0 %v462
    %1381 = vmatpush1.msra.mxu0 %v461
    %1382 = vmatprep.subr.mxu0 0.0
    %1383 = vmatpush1.msra.mxu0 0.0
    %1384 = vmatprep.subr.mxu0 0.0
    %1385 = vmatpush1.msra.mxu0 0.0
    %1386 = vmatprep.subr.mxu0 0.0
    %1387 = vmatpush1.msra.mxu0 0.0
    %1388 = vmatprep.subr.mxu0 0.0
    %1389 = vmatpush1.msra.mxu0 0.0
    %1390 = vmatprep.subr.mxu0 0.0
    %1391 = vmatpush1.msra.mxu0 0.0
    %1392 = vmatprep.subr.mxu0 0.0
    %1393 = vmatpush1.msra.mxu0 0.0
    %1394 = vmatprep.subr.mxu0 0.0
    %1395 = vmatpush1.msra.mxu0 0.0
    %1396 = vmatprep.subr.mxu0 0.0
    %1397 = vmatpush1.msra.mxu0 0.0
    %1398 = vmatprep.subr.mxu0 0.0
    %1399 = vmatpush1.msra.mxu0 0.0
    %1400 = vmatprep.subr.mxu0 0.0
    %1401 = vmatpush1.msra.mxu0 0.0
    %1402 = vmatprep.subr.mxu0 0.0
    %1403 = vmatpush1.msra.mxu0 0.0
    %1404 = vmatprep.subr.mxu0 0.0
    %1405 = vmatpush1.msra.mxu0 0.0
    %1406 = vmatprep.subr.mxu0 0.0
    %1407 = vmatpush1.msra.mxu0 0.0
    %1408 = vmatprep.subr.mxu0 0.0
    %1409 = vmatpush1.msra.mxu0 0.0
    %1410 = vmatprep.subr.mxu0 0.0
    %1411 = vmatpush1.msra.mxu0 0.0
    %1412 = vmatprep.subr.mxu0 0.0
    %1413 = vmatpush1.msra.mxu0 0.0
    %1414 = vmatprep.mubr.f32.mxu0 0.0
    %1415 = vmatmul.mubr.f32.gmra.mrb[0].mxu0 %v1342
    %v1416 = vpop.f32.mrb[0].mxu0
    %v1417 = vadd.f32 0.0, %v1416
    %v1418 = vpop.f32.mrb[0].mxu0
    %v1419 = vadd.f32 0.0, %v1418
    %1420 = vdwg.mxu0
    %1421 = vmatprep.subr.mxu0 %v404
    %1422 = vmatpush1.msra.mxu0 %v403
    %1423 = vmatprep.subr.mxu0 %v408
    %1424 = vmatpush1.msra.mxu0 %v407
    %1425 = vmatprep.subr.mxu0 %v412
    %1426 = vmatpush1.msra.mxu0 %v411
    %1427 = vmatprep.subr.mxu0 %v416
    %1428 = vmatpush1.msra.mxu0 %v415
    %1429 = vmatprep.subr.mxu0 %v420
    %1430 = vmatpush1.msra.mxu0 %v419
    %1431 = vmatprep.subr.mxu0 %v424
    %1432 = vmatpush1.msra.mxu0 %v423
    %1433 = vmatprep.subr.mxu0 %v428
    %1434 = vmatpush1.msra.mxu0 %v427
    %1435 = vmatprep.subr.mxu0 %v432
    %1436 = vmatpush1.msra.mxu0 %v431
    %1437 = vmatprep.subr.mxu0 %v436
    %1438 = vmatpush1.msra.mxu0 %v435
    %1439 = vmatprep.subr.mxu0 %v440
    %1440 = vmatpush1.msra.mxu0 %v439
    %1441 = vmatprep.subr.mxu0 %v444
    %1442 = vmatpush1.msra.mxu0 %v443
    %1443 = vmatprep.subr.mxu0 %v448
    %1444 = vmatpush1.msra.mxu0 %v447
    %1445 = vmatprep.subr.mxu0 %v452
    %1446 = vmatpush1.msra.mxu0 %v451
    %1447 = vmatprep.subr.mxu0 %v456
    %1448 = vmatpush1.msra.mxu0 %v455
    %1449 = vmatprep.subr.mxu0 %v460
    %1450 = vmatpush1.msra.mxu0 %v459
    %1451 = vmatprep.subr.mxu0 %v464
    %1452 = vmatpush1.msra.mxu0 %v463
    %1453 = vmatprep.subr.mxu0 0.0
    %1454 = vmatpush1.msra.mxu0 0.0
    %1455 = vmatprep.subr.mxu0 0.0
    %1456 = vmatpush1.msra.mxu0 0.0
    %1457 = vmatprep.subr.mxu0 0.0
    %1458 = vmatpush1.msra.mxu0 0.0
    %1459 = vmatprep.subr.mxu0 0.0
    %1460 = vmatpush1.msra.mxu0 0.0
    %1461 = vmatprep.subr.mxu0 0.0
    %1462 = vmatpush1.msra.mxu0 0.0
    %1463 = vmatprep.subr.mxu0 0.0
    %1464 = vmatpush1.msra.mxu0 0.0
    %1465 = vmatprep.subr.mxu0 0.0
    %1466 = vmatpush1.msra.mxu0 0.0
    %1467 = vmatprep.subr.mxu0 0.0
    %1468 = vmatpush1.msra.mxu0 0.0
    %1469 = vmatprep.subr.mxu0 0.0
    %1470 = vmatpush1.msra.mxu0 0.0
    %1471 = vmatprep.subr.mxu0 0.0
    %1472 = vmatpush1.msra.mxu0 0.0
    %1473 = vmatprep.subr.mxu0 0.0
    %1474 = vmatpush1.msra.mxu0 0.0
    %1475 = vmatprep.subr.mxu0 0.0
    %1476 = vmatpush1.msra.mxu0 0.0
    %1477 = vmatprep.subr.mxu0 0.0
    %1478 = vmatpush1.msra.mxu0 0.0
    %1479 = vmatprep.subr.mxu0 0.0
    %1480 = vmatpush1.msra.mxu0 0.0
    %1481 = vmatprep.subr.mxu0 0.0
    %1482 = vmatpush1.msra.mxu0 0.0
    %1483 = vmatprep.subr.mxu0 0.0
    %1484 = vmatpush1.msra.mxu0 0.0
    %1485 = vmatprep.mubr.f32.mxu0 0.0
    %1486 = vmatmul.mubr.f32.gmra.mrb[0].mxu0 %v1342
    %v1487 = vpop.f32.mrb[0].mxu0
    %v1488 = vadd.f32 0.0, %v1487
    %v1489 = vpop.f32.mrb[0].mxu0
    %v1490 = vadd.f32 0.0, %v1489
    %1491 = vdwg.mxu0
    %v1492 = vadd.f32 %v1346, %v1417
    %v1493 = vadd.f32 %v1347, %v1419
    %v1494 = vadd.f32 %v1348, %v1488
    %v1495 = vadd.f32 %v1349, %v1490
    %v1496 = vxor.u32 %v1492, 2147483648
    %v1497 = vxor.u32 %v1493, 2147483648
    %v1498 = vxor.u32 %v1494, 2147483648
    %v1499 = vmul.f32 %v1496, 1.442695
    %v1500 = vpow.pop %v1499
    %v1501 = vmul.f32 %v1497, 1.442695
    %v1502 = vpow.pop %v1501
    %v1503 = vmul.f32 %v1498, 1.442695
    %v1504 = vpow.pop %v1503
    %v1505 = vadd.f32 %v1500, 1.0
    %v1506 = vadd.f32 %v1502, 1.0
    %v1507 = vadd.f32 %v1504, 1.0
    %v1508 = vrcp.pop %v1505
    %v1509 = vmul.f32 1.0, %v1508
    %v1510 = vrcp.pop %v1506
    %v1511 = vmul.f32 1.0, %v1510
    %v1512 = vrcp.pop %v1507
    %v1513 = vmul.f32 1.0, %v1512
    %v1514 = vtanh.pop %v1495
    %v1515 = vmul.f32 %v1511, %v1340
    %v1516 = vmul.f32 %v1509, %v1514
    %v1517 = vadd.f32 %v1515, %v1516
    %v1518 = vtanh.pop %v1517
    %v1519 = vmul.f32 %v1513, %v1518
    %s1520 = smul.u32 6, 4
    %s1521 = smul.addr %s1520, 8
    %s1522 = scalar_lea.vmem [#allocation2], %s1521
    %v1523 = vld [vmem:[%s1522] sm:$0xff]
    %v1524 = vld [vmem:[%s1522 + $0x8] sm:$0xff]
    %v1525 = vld [vmem:[%s1522 + $0x10] sm:$0xff]
    %v1526 = vld [vmem:[%s1522 + $0x18] sm:$0xff]
    %1527 = vmatprep.subr.mxu0 %v402
    %1528 = vmatpush1.msra.mxu0 %v401
    %1529 = vmatprep.subr.mxu0 %v406
    %1530 = vmatpush1.msra.mxu0 %v405
    %1531 = vmatprep.subr.mxu0 %v410
    %1532 = vmatpush1.msra.mxu0 %v409
    %1533 = vmatprep.subr.mxu0 %v414
    %1534 = vmatpush1.msra.mxu0 %v413
    %1535 = vmatprep.subr.mxu0 %v418
    %1536 = vmatpush1.msra.mxu0 %v417
    %1537 = vmatprep.subr.mxu0 %v422
    %1538 = vmatpush1.msra.mxu0 %v421
    %1539 = vmatprep.subr.mxu0 %v426
    %1540 = vmatpush1.msra.mxu0 %v425
    %1541 = vmatprep.subr.mxu0 %v430
    %1542 = vmatpush1.msra.mxu0 %v429
    %1543 = vmatprep.subr.mxu0 %v434
    %1544 = vmatpush1.msra.mxu0 %v433
    %1545 = vmatprep.subr.mxu0 %v438
    %1546 = vmatpush1.msra.mxu0 %v437
    %1547 = vmatprep.subr.mxu0 %v442
    %1548 = vmatpush1.msra.mxu0 %v441
    %1549 = vmatprep.subr.mxu0 %v446
    %1550 = vmatpush1.msra.mxu0 %v445
    %1551 = vmatprep.subr.mxu0 %v450
    %1552 = vmatpush1.msra.mxu0 %v449
    %1553 = vmatprep.subr.mxu0 %v454
    %1554 = vmatpush1.msra.mxu0 %v453
    %1555 = vmatprep.subr.mxu0 %v458
    %1556 = vmatpush1.msra.mxu0 %v457
    %1557 = vmatprep.subr.mxu0 %v462
    %1558 = vmatpush1.msra.mxu0 %v461
    %1559 = vmatprep.subr.mxu0 0.0
    %1560 = vmatpush1.msra.mxu0 0.0
    %1561 = vmatprep.subr.mxu0 0.0
    %1562 = vmatpush1.msra.mxu0 0.0
    %1563 = vmatprep.subr.mxu0 0.0
    %1564 = vmatpush1.msra.mxu0 0.0
    %1565 = vmatprep.subr.mxu0 0.0
    %1566 = vmatpush1.msra.mxu0 0.0
    %1567 = vmatprep.subr.mxu0 0.0
    %1568 = vmatpush1.msra.mxu0 0.0
    %1569 = vmatprep.subr.mxu0 0.0
    %1570 = vmatpush1.msra.mxu0 0.0
    %1571 = vmatprep.subr.mxu0 0.0
    %1572 = vmatpush1.msra.mxu0 0.0
    %1573 = vmatprep.subr.mxu0 0.0
    %1574 = vmatpush1.msra.mxu0 0.0
    %1575 = vmatprep.subr.mxu0 0.0
    %1576 = vmatpush1.msra.mxu0 0.0
    %1577 = vmatprep.subr.mxu0 0.0
    %1578 = vmatpush1.msra.mxu0 0.0
    %1579 = vmatprep.subr.mxu0 0.0
    %1580 = vmatpush1.msra.mxu0 0.0
    %1581 = vmatprep.subr.mxu0 0.0
    %1582 = vmatpush1.msra.mxu0 0.0
    %1583 = vmatprep.subr.mxu0 0.0
    %1584 = vmatpush1.msra.mxu0 0.0
    %1585 = vmatprep.subr.mxu0 0.0
    %1586 = vmatpush1.msra.mxu0 0.0
    %1587 = vmatprep.subr.mxu0 0.0
    %1588 = vmatpush1.msra.mxu0 0.0
    %1589 = vmatprep.subr.mxu0 0.0
    %1590 = vmatpush1.msra.mxu0 0.0
    %1591 = vmatprep.mubr.f32.mxu0 0.0
    %1592 = vmatmul.mubr.f32.gmra.mrb[0].mxu0 %v1519
    %v1593 = vpop.f32.mrb[0].mxu0
    %v1594 = vadd.f32 0.0, %v1593
    %v1595 = vpop.f32.mrb[0].mxu0
    %v1596 = vadd.f32 0.0, %v1595
    %1597 = vdwg.mxu0
    %1598 = vmatprep.subr.mxu0 %v404
    %1599 = vmatpush1.msra.mxu0 %v403
    %1600 = vmatprep.subr.mxu0 %v408
    %1601 = vmatpush1.msra.mxu0 %v407
    %1602 = vmatprep.subr.mxu0 %v412
    %1603 = vmatpush1.msra.mxu0 %v411
    %1604 = vmatprep.subr.mxu0 %v416
    %1605 = vmatpush1.msra.mxu0 %v415
    %1606 = vmatprep.subr.mxu0 %v420
    %1607 = vmatpush1.msra.mxu0 %v419
    %1608 = vmatprep.subr.mxu0 %v424
    %1609 = vmatpush1.msra.mxu0 %v423
    %1610 = vmatprep.subr.mxu0 %v428
    %1611 = vmatpush1.msra.mxu0 %v427
    %1612 = vmatprep.subr.mxu0 %v432
    %1613 = vmatpush1.msra.mxu0 %v431
    %1614 = vmatprep.subr.mxu0 %v436
    %1615 = vmatpush1.msra.mxu0 %v435
    %1616 = vmatprep.subr.mxu0 %v440
    %1617 = vmatpush1.msra.mxu0 %v439
    %1618 = vmatprep.subr.mxu0 %v444
    %1619 = vmatpush1.msra.mxu0 %v443
    %1620 = vmatprep.subr.mxu0 %v448
    %1621 = vmatpush1.msra.mxu0 %v447
    %1622 = vmatprep.subr.mxu0 %v452
    %1623 = vmatpush1.msra.mxu0 %v451
    %1624 = vmatprep.subr.mxu0 %v456
    %1625 = vmatpush1.msra.mxu0 %v455
    %1626 = vmatprep.subr.mxu0 %v460
    %1627 = vmatpush1.msra.mxu0 %v459
    %1628 = vmatprep.subr.mxu0 %v464
    %1629 = vmatpush1.msra.mxu0 %v463
    %1630 = vmatprep.subr.mxu0 0.0
    %1631 = vmatpush1.msra.mxu0 0.0
    %1632 = vmatprep.subr.mxu0 0.0
    %1633 = vmatpush1.msra.mxu0 0.0
    %1634 = vmatprep.subr.mxu0 0.0
    %1635 = vmatpush1.msra.mxu0 0.0
    %1636 = vmatprep.subr.mxu0 0.0
    %1637 = vmatpush1.msra.mxu0 0.0
    %1638 = vmatprep.subr.mxu0 0.0
    %1639 = vmatpush1.msra.mxu0 0.0
    %1640 = vmatprep.subr.mxu0 0.0
    %1641 = vmatpush1.msra.mxu0 0.0
    %1642 = vmatprep.subr.mxu0 0.0
    %1643 = vmatpush1.msra.mxu0 0.0
    %1644 = vmatprep.subr.mxu0 0.0
    %1645 = vmatpush1.msra.mxu0 0.0
    %1646 = vmatprep.subr.mxu0 0.0
    %1647 = vmatpush1.msra.mxu0 0.0
    %1648 = vmatprep.subr.mxu0 0.0
    %1649 = vmatpush1.msra.mxu0 0.0
    %1650 = vmatprep.subr.mxu0 0.0
    %1651 = vmatpush1.msra.mxu0 0.0
    %1652 = vmatprep.subr.mxu0 0.0
    %1653 = vmatpush1.msra.mxu0 0.0
    %1654 = vmatprep.subr.mxu0 0.0
    %1655 = vmatpush1.msra.mxu0 0.0
    %1656 = vmatprep.subr.mxu0 0.0
    %1657 = vmatpush1.msra.mxu0 0.0
    %1658 = vmatprep.subr.mxu0 0.0
    %1659 = vmatpush1.msra.mxu0 0.0
    %1660 = vmatprep.subr.mxu0 0.0
    %1661 = vmatpush1.msra.mxu0 0.0
    %1662 = vmatprep.mubr.f32.mxu0 0.0
    %1663 = vmatmul.mubr.f32.gmra.mrb[0].mxu0 %v1519
    %v1664 = vpop.f32.mrb[0].mxu0
    %v1665 = vadd.f32 0.0, %v1664
    %v1666 = vpop.f32.mrb[0].mxu0
    %v1667 = vadd.f32 0.0, %v1666
    %1668 = vdwg.mxu0
    %v1669 = vadd.f32 %v1523, %v1594
    %v1670 = vadd.f32 %v1524, %v1596
    %v1671 = vadd.f32 %v1525, %v1665
    %v1672 = vadd.f32 %v1526, %v1667
    %v1673 = vxor.u32 %v1669, 2147483648
    %v1674 = vxor.u32 %v1670, 2147483648
    %v1675 = vxor.u32 %v1671, 2147483648
    %v1676 = vmul.f32 %v1673, 1.442695
    %v1677 = vpow.pop %v1676
    %v1678 = vmul.f32 %v1674, 1.442695
    %v1679 = vpow.pop %v1678
    %v1680 = vmul.f32 %v1675, 1.442695
    %v1681 = vpow.pop %v1680
    %v1682 = vadd.f32 %v1677, 1.0
    %v1683 = vadd.f32 %v1679, 1.0
    %v1684 = vadd.f32 %v1681, 1.0
    %v1685 = vrcp.pop %v1682
    %v1686 = vmul.f32 1.0, %v1685
    %v1687 = vrcp.pop %v1683
    %v1688 = vmul.f32 1.0, %v1687
    %v1689 = vrcp.pop %v1684
    %v1690 = vmul.f32 1.0, %v1689
    %v1691 = vtanh.pop %v1672
    %v1692 = vmul.f32 %v1688, %v1517
    %v1693 = vmul.f32 %v1686, %v1691
    %v1694 = vadd.f32 %v1692, %v1693
    %v1695 = vtanh.pop %v1694
    %v1696 = vmul.f32 %v1690, %v1695
    %s1697 = smul.u32 7, 4
    %s1698 = smul.addr %s1697, 8
    %s1699 = scalar_lea.vmem [#allocation2], %s1698
    %v1700 = vld [vmem:[%s1699] sm:$0xff]
    %v1701 = vld [vmem:[%s1699 + $0x8] sm:$0xff]
    %v1702 = vld [vmem:[%s1699 + $0x10] sm:$0xff]
    %v1703 = vld [vmem:[%s1699 + $0x18] sm:$0xff]
    %1704 = vmatprep.subr.mxu0 %v402
    %1705 = vmatpush1.msra.mxu0 %v401
    %1706 = vmatprep.subr.mxu0 %v406
    %1707 = vmatpush1.msra.mxu0 %v405
    %1708 = vmatprep.subr.mxu0 %v410
    %1709 = vmatpush1.msra.mxu0 %v409
    %1710 = vmatprep.subr.mxu0 %v414
    %1711 = vmatpush1.msra.mxu0 %v413
    %1712 = vmatprep.subr.mxu0 %v418
    %1713 = vmatpush1.msra.mxu0 %v417
    %1714 = vmatprep.subr.mxu0 %v422
    %1715 = vmatpush1.msra.mxu0 %v421
    %1716 = vmatprep.subr.mxu0 %v426
    %1717 = vmatpush1.msra.mxu0 %v425
    %1718 = vmatprep.subr.mxu0 %v430
    %1719 = vmatpush1.msra.mxu0 %v429
    %1720 = vmatprep.subr.mxu0 %v434
    %1721 = vmatpush1.msra.mxu0 %v433
    %1722 = vmatprep.subr.mxu0 %v438
    %1723 = vmatpush1.msra.mxu0 %v437
    %1724 = vmatprep.subr.mxu0 %v442
    %1725 = vmatpush1.msra.mxu0 %v441
    %1726 = vmatprep.subr.mxu0 %v446
    %1727 = vmatpush1.msra.mxu0 %v445
    %1728 = vmatprep.subr.mxu0 %v450
    %1729 = vmatpush1.msra.mxu0 %v449
    %1730 = vmatprep.subr.mxu0 %v454
    %1731 = vmatpush1.msra.mxu0 %v453
    %1732 = vmatprep.subr.mxu0 %v458
    %1733 = vmatpush1.msra.mxu0 %v457
    %1734 = vmatprep.subr.mxu0 %v462
    %1735 = vmatpush1.msra.mxu0 %v461
    %1736 = vmatprep.subr.mxu0 0.0
    %1737 = vmatpush1.msra.mxu0 0.0
    %1738 = vmatprep.subr.mxu0 0.0
    %1739 = vmatpush1.msra.mxu0 0.0
    %1740 = vmatprep.subr.mxu0 0.0
    %1741 = vmatpush1.msra.mxu0 0.0
    %1742 = vmatprep.subr.mxu0 0.0
    %1743 = vmatpush1.msra.mxu0 0.0
    %1744 = vmatprep.subr.mxu0 0.0
    %1745 = vmatpush1.msra.mxu0 0.0
    %1746 = vmatprep.subr.mxu0 0.0
    %1747 = vmatpush1.msra.mxu0 0.0
    %1748 = vmatprep.subr.mxu0 0.0
    %1749 = vmatpush1.msra.mxu0 0.0
    %1750 = vmatprep.subr.mxu0 0.0
    %1751 = vmatpush1.msra.mxu0 0.0
    %1752 = vmatprep.subr.mxu0 0.0
    %1753 = vmatpush1.msra.mxu0 0.0
    %1754 = vmatprep.subr.mxu0 0.0
    %1755 = vmatpush1.msra.mxu0 0.0
    %1756 = vmatprep.subr.mxu0 0.0
    %1757 = vmatpush1.msra.mxu0 0.0
    %1758 = vmatprep.subr.mxu0 0.0
    %1759 = vmatpush1.msra.mxu0 0.0
    %1760 = vmatprep.subr.mxu0 0.0
    %1761 = vmatpush1.msra.mxu0 0.0
    %1762 = vmatprep.subr.mxu0 0.0
    %1763 = vmatpush1.msra.mxu0 0.0
    %1764 = vmatprep.subr.mxu0 0.0
    %1765 = vmatpush1.msra.mxu0 0.0
    %1766 = vmatprep.subr.mxu0 0.0
    %1767 = vmatpush1.msra.mxu0 0.0
    %1768 = vmatprep.mubr.f32.mxu0 0.0
    %1769 = vmatmul.mubr.f32.gmra.mrb[0].mxu0 %v1696
    %v1770 = vpop.f32.mrb[0].mxu0
    %v1771 = vadd.f32 0.0, %v1770
    %v1772 = vpop.f32.mrb[0].mxu0
    %v1773 = vadd.f32 0.0, %v1772
    %1774 = vdwg.mxu0
    %1775 = vmatprep.subr.mxu0 %v404
    %1776 = vmatpush1.msra.mxu0 %v403
    %1777 = vmatprep.subr.mxu0 %v408
    %1778 = vmatpush1.msra.mxu0 %v407
    %1779 = vmatprep.subr.mxu0 %v412
    %1780 = vmatpush1.msra.mxu0 %v411
    %1781 = vmatprep.subr.mxu0 %v416
    %1782 = vmatpush1.msra.mxu0 %v415
    %1783 = vmatprep.subr.mxu0 %v420
    %1784 = vmatpush1.msra.mxu0 %v419
    %1785 = vmatprep.subr.mxu0 %v424
    %1786 = vmatpush1.msra.mxu0 %v423
    %1787 = vmatprep.subr.mxu0 %v428
    %1788 = vmatpush1.msra.mxu0 %v427
    %1789 = vmatprep.subr.mxu0 %v432
    %1790 = vmatpush1.msra.mxu0 %v431
    %1791 = vmatprep.subr.mxu0 %v436
    %1792 = vmatpush1.msra.mxu0 %v435
    %1793 = vmatprep.subr.mxu0 %v440
    %1794 = vmatpush1.msra.mxu0 %v439
    %1795 = vmatprep.subr.mxu0 %v444
    %1796 = vmatpush1.msra.mxu0 %v443
    %1797 = vmatprep.subr.mxu0 %v448
    %1798 = vmatpush1.msra.mxu0 %v447
    %1799 = vmatprep.subr.mxu0 %v452
    %1800 = vmatpush1.msra.mxu0 %v451
    %1801 = vmatprep.subr.mxu0 %v456
    %1802 = vmatpush1.msra.mxu0 %v455
    %1803 = vmatprep.subr.mxu0 %v460
    %1804 = vmatpush1.msra.mxu0 %v459
    %1805 = vmatprep.subr.mxu0 %v464
    %1806 = vmatpush1.msra.mxu0 %v463
    %1807 = vmatprep.subr.mxu0 0.0
    %1808 = vmatpush1.msra.mxu0 0.0
    %1809 = vmatprep.subr.mxu0 0.0
    %1810 = vmatpush1.msra.mxu0 0.0
    %1811 = vmatprep.subr.mxu0 0.0
    %1812 = vmatpush1.msra.mxu0 0.0
    %1813 = vmatprep.subr.mxu0 0.0
    %1814 = vmatpush1.msra.mxu0 0.0
    %1815 = vmatprep.subr.mxu0 0.0
    %1816 = vmatpush1.msra.mxu0 0.0
    %1817 = vmatprep.subr.mxu0 0.0
    %1818 = vmatpush1.msra.mxu0 0.0
    %1819 = vmatprep.subr.mxu0 0.0
    %1820 = vmatpush1.msra.mxu0 0.0
    %1821 = vmatprep.subr.mxu0 0.0
    %1822 = vmatpush1.msra.mxu0 0.0
    %1823 = vmatprep.subr.mxu0 0.0
    %1824 = vmatpush1.msra.mxu0 0.0
    %1825 = vmatprep.subr.mxu0 0.0
    %1826 = vmatpush1.msra.mxu0 0.0
    %1827 = vmatprep.subr.mxu0 0.0
    %1828 = vmatpush1.msra.mxu0 0.0
    %1829 = vmatprep.subr.mxu0 0.0
    %1830 = vmatpush1.msra.mxu0 0.0
    %1831 = vmatprep.subr.mxu0 0.0
    %1832 = vmatpush1.msra.mxu0 0.0
    %1833 = vmatprep.subr.mxu0 0.0
    %1834 = vmatpush1.msra.mxu0 0.0
    %1835 = vmatprep.subr.mxu0 0.0
    %1836 = vmatpush1.msra.mxu0 0.0
    %1837 = vmatprep.subr.mxu0 0.0
    %1838 = vmatpush1.msra.mxu0 0.0
    %1839 = vmatprep.mubr.f32.mxu0 0.0
    %1840 = vmatmul.mubr.f32.gmra.mrb[0].mxu0 %v1696
    %v1841 = vpop.f32.mrb[0].mxu0
    %v1842 = vadd.f32 0.0, %v1841
    %v1843 = vpop.f32.mrb[0].mxu0
    %v1844 = vadd.f32 0.0, %v1843
    %1845 = vdwg.mxu0
    %v1846 = vadd.f32 %v1700, %v1771
    %v1847 = vadd.f32 %v1701, %v1773
    %v1848 = vadd.f32 %v1702, %v1842
    %v1849 = vadd.f32 %v1703, %v1844
    %v1850 = vxor.u32 %v1846, 2147483648
    %v1851 = vxor.u32 %v1847, 2147483648
    %v1852 = vxor.u32 %v1848, 2147483648
    %v1853 = vmul.f32 %v1850, 1.442695
    %v1854 = vpow.pop %v1853
    %v1855 = vmul.f32 %v1851, 1.442695
    %v1856 = vpow.pop %v1855
    %v1857 = vmul.f32 %v1852, 1.442695
    %v1858 = vpow.pop %v1857
    %v1859 = vadd.f32 %v1854, 1.0
    %v1860 = vadd.f32 %v1856, 1.0
    %v1861 = vadd.f32 %v1858, 1.0
    %v1862 = vrcp.pop %v1859
    %v1863 = vmul.f32 1.0, %v1862
    %v1864 = vrcp.pop %v1860
    %v1865 = vmul.f32 1.0, %v1864
    %v1866 = vrcp.pop %v1861
    %v1867 = vmul.f32 1.0, %v1866
    %v1868 = vtanh.pop %v1849
    %v1869 = vmul.f32 %v1865, %v1694
    %v1870 = vmul.f32 %v1863, %v1868
    %v1871 = vadd.f32 %v1869, %v1870
    %v1872 = vtanh.pop %v1871
    %v1873 = vmul.f32 %v1867, %v1872
    %v1874 = vld [vmem:[#allocation8] sm:$0xff]
    %v1875 = vld [vmem:[#allocation8 + $0x8] sm:$0xff]
    %v1876 = vld [vmem:[#allocation8 + $0x10] sm:$0xff]
    %v1877 = vld [vmem:[#allocation8 + $0x18] sm:$0xff]
    %v1878 = vld [vmem:[#allocation8 + $0x20] sm:$0xff]
    %v1879 = vld [vmem:[#allocation8 + $0x28] sm:$0xff]
    %v1880 = vld [vmem:[#allocation8 + $0x30] sm:$0xff]
    %v1881 = vld [vmem:[#allocation8 + $0x38] sm:$0xff]
    %v1882 = vld [vmem:[#allocation8 + $0x40] sm:$0xff]
    %v1883 = vld [vmem:[#allocation8 + $0x48] sm:$0xff]
    %v1884 = vld [vmem:[#allocation8 + $0x50] sm:$0xff]
    %v1885 = vld [vmem:[#allocation8 + $0x58] sm:$0xff]
    %v1886 = vld [vmem:[#allocation8 + $0x60] sm:$0xff]
    %v1887 = vld [vmem:[#allocation8 + $0x68] sm:$0xff]
    %v1888 = vld [vmem:[#allocation8 + $0x70] sm:$0xff]
    %v1889 = vld [vmem:[#allocation8 + $0x78] sm:$0xff]
    %v1890 = vld [vmem:[%s5] sm:$0x1]
    %v1892 = vlaneseq
    %v1893 = vshrl.u32 %v1892, 7
    %v1894 = vsub.s32 0, %v1893
    %v1895 = vrot.slane %v1890, %v1894
    %1897 = vmatprep.subr.mxu0 0.0
    %1898 = vmatpush1.msra.mxu0 %v1874
    %1899 = vmatprep.subr.mxu0 0.0
    %1900 = vmatpush1.msra.mxu0 %v1875
    %1901 = vmatprep.subr.mxu0 0.0
    %1902 = vmatpush1.msra.mxu0 %v1876
    %1903 = vmatprep.subr.mxu0 0.0
    %1904 = vmatpush1.msra.mxu0 %v1877
    %1905 = vmatprep.subr.mxu0 0.0
    %1906 = vmatpush1.msra.mxu0 %v1878
    %1907 = vmatprep.subr.mxu0 0.0
    %1908 = vmatpush1.msra.mxu0 %v1879
    %1909 = vmatprep.subr.mxu0 0.0
    %1910 = vmatpush1.msra.mxu0 %v1880
    %1911 = vmatprep.subr.mxu0 0.0
    %1912 = vmatpush1.msra.mxu0 %v1881
    %1913 = vmatprep.subr.mxu0 0.0
    %1914 = vmatpush1.msra.mxu0 %v1882
    %1915 = vmatprep.subr.mxu0 0.0
    %1916 = vmatpush1.msra.mxu0 %v1883
    %1917 = vmatprep.subr.mxu0 0.0
    %1918 = vmatpush1.msra.mxu0 %v1884
    %1919 = vmatprep.subr.mxu0 0.0
    %1920 = vmatpush1.msra.mxu0 %v1885
    %1921 = vmatprep.subr.mxu0 0.0
    %1922 = vmatpush1.msra.mxu0 %v1886
    %1923 = vmatprep.subr.mxu0 0.0
    %1924 = vmatpush1.msra.mxu0 %v1887
    %1925 = vmatprep.subr.mxu0 0.0
    %1926 = vmatpush1.msra.mxu0 %v1888
    %1927 = vmatprep.subr.mxu0 0.0
    %1928 = vmatpush1.msra.mxu0 %v1889
    %1929 = vmatprep.subr.mxu0 0.0
    %1930 = vmatpush1.msra.mxu0 0.0
    %1931 = vmatprep.subr.mxu0 0.0
    %1932 = vmatpush1.msra.mxu0 0.0
    %1933 = vmatprep.subr.mxu0 0.0
    %1934 = vmatpush1.msra.mxu0 0.0
    %1935 = vmatprep.subr.mxu0 0.0
    %1936 = vmatpush1.msra.mxu0 0.0
    %1937 = vmatprep.subr.mxu0 0.0
    %1938 = vmatpush1.msra.mxu0 0.0
    %1939 = vmatprep.subr.mxu0 0.0
    %1940 = vmatpush1.msra.mxu0 0.0
    %1941 = vmatprep.subr.mxu0 0.0
    %1942 = vmatpush1.msra.mxu0 0.0
    %1943 = vmatprep.subr.mxu0 0.0
    %1944 = vmatpush1.msra.mxu0 0.0
    %1945 = vmatprep.subr.mxu0 0.0
    %1946 = vmatpush1.msra.mxu0 0.0
    %1947 = vmatprep.subr.mxu0 0.0
    %1948 = vmatpush1.msra.mxu0 0.0
    %1949 = vmatprep.subr.mxu0 0.0
    %1950 = vmatpush1.msra.mxu0 0.0
    %1951 = vmatprep.subr.mxu0 0.0
    %1952 = vmatpush1.msra.mxu0 0.0
    %1953 = vmatprep.subr.mxu0 0.0
    %1954 = vmatpush1.msra.mxu0 0.0
    %1955 = vmatprep.subr.mxu0 0.0
    %1956 = vmatpush1.msra.mxu0 0.0
    %1957 = vmatprep.subr.mxu0 0.0
    %1958 = vmatpush1.msra.mxu0 0.0
    %1959 = vmatprep.subr.mxu0 0.0
    %1960 = vmatpush1.msra.mxu0 0.0
    %1961 = vmatprep.mubr.f32.mxu0 0.0
    %1962 = vmatmul.mubr.f32.gmra.mrb[0].mxu0 %v1873
    %v1963 = vpop.f32.mrb[0].mxu0
    %v1964 = vadd.f32 %v1895, %v1963
    %v1965 = vpop.f32.mrb[0].mxu0
    %1966 = vdwg.mxu0
    %1967 = vst [vmem:[#allocation9] sm:$0xff] %v1964
    // Predicated region
    $region38: #{tpu_custom_call.1} parent=1 // pred_check
      _
    $region39: #{tpu_custom_call.1} parent=1 // pred_check_branch
      %1969 = sbr.rel (0) target = $region41
    $region40: #{tpu_custom_call.1} parent=1 // pred_region
      %s1971 = ssub.s32 128, 128
      %1972 = vsyncadd [#allocation5], %s1971
      %s1974 = sshll.u32 [#allocation9], 4
      %s1975 = int_to_ptr.vmem [resolvable:$true] %s1974
      %1977 = dma.vmem_to_hbm [thread:$0]  %s1975, 128, %s6, [#allocation5]
    $region41: #{tpu_custom_call.1} parent=1 // pred_fallthru
      _
    // Predicated region
    $region42: #{tpu_custom_call.1} parent=1 // pred_check
      _
    $region43: #{tpu_custom_call.1} parent=1 // pred_check_branch
      %1979 = sbr.rel (0) target = $region45
    $region44: #{tpu_custom_call.1} parent=1 // pred_region
      %1980 = dma.done [#allocation5], 128
    $region45: #{tpu_custom_call.1} parent=1 // pred_fallthru
      _
    %1981 = vsyncpa [#allocation4], 1
    %1982 = vsyncpa [#allocation7], 1
    %1983 = vsyncpa [#allocation5], 1

</llo_original>
